<compile_context>
chip_gen: v7x
topology: tpu7x:2x2x1
jax: 0.10.0
libtpu: 0.0.40
codegen_flags: <defaults>
</compile_context>

<pallas_src>
import numpy as np
import jax
import jax.numpy as jnp
from jax.experimental import pallas as pl
from jax.experimental.pallas import tpu as pltpu

N_STEPS = 8            # glv.n_steps in the reference implementation
LANES = 128            # TPU vreg lane width


def make_coef(n_steps=N_STEPS):
    """torch.pow(0.8, arange(n_steps-1, -1, -1)) as a compile-time constant."""
    return 0.8 ** np.arange(n_steps - 1, -1, -1, dtype=np.float32)


def _make_selection_weights(coef_t):
    """Wsel (LANES*T, LANES) with Wsel[p*T + t, p] = coef[t], split into bf16 hi/lo.

    A lane-dense input row (128 pixels x T timesteps, flat) matmul'd with Wsel gives
    the weighted time-sum for those 128 pixels, already in lane-dense output order.
    """
    T = coef_t.shape[0]
    w = np.zeros((LANES * T, LANES), np.float32)
    for p in range(LANES):
        w[p * T:(p + 1) * T, p] = coef_t
    w_f32 = jnp.asarray(w)
    w_hi = w_f32.astype(jnp.bfloat16)
    w_lo = (w_f32 - w_hi.astype(jnp.float32)).astype(jnp.bfloat16)
    return w_hi, w_lo


def _membrane_kernel_f32(w_hi_ref, w_lo_ref, x_ref, o_ref):
    # f32 input: explicit 3-pass bf16 decomposition (== lax.Precision.HIGH).
    # Keeps ~f32 accuracy of the 8-term weighted sum; each dot is one bf16 MXU pass.
    x = x_ref[...]
    x_hi = x.astype(jnp.bfloat16)
    x_lo = (x - x_hi.astype(jnp.float32)).astype(jnp.bfloat16)
    w_hi = w_hi_ref[...]
    acc = jnp.dot(x_hi, w_hi, preferred_element_type=jnp.float32)
    acc = acc + jnp.dot(x_lo, w_hi, preferred_element_type=jnp.float32)
    acc = acc + jnp.dot(x_hi, w_lo_ref[...], preferred_element_type=jnp.float32)
    o_ref[...] = acc.astype(o_ref.dtype)


def _membrane_kernel_bf16(w_hi_ref, w_lo_ref, x_ref, o_ref):
    # bf16 input: feed the MXU natively (no whole-tile VPU upcast), f32 accumulator.
    # Two passes keep the coefficients at ~f32 accuracy; both hide under the DMA.
    x = x_ref[...]
    acc = jnp.dot(x, w_hi_ref[...], preferred_element_type=jnp.float32)
    acc = acc + jnp.dot(x, w_lo_ref[...], preferred_element_type=jnp.float32)
    o_ref[...] = acc.astype(o_ref.dtype)


def _pick_block_rows(n_rows, bytes_per_row, sub_align, target_bytes=4 * 1024 * 1024):
    """Rows per grid step: ~4 MiB input block (v7x-safe when double-buffered),
    sublane-aligned, >= 2 steps when possible, and an even grid length so the
    'parallel' axis splits evenly across v7x's two TensorCores."""
    if n_rows <= sub_align:
        return n_rows
    by_size = max(sub_align, (target_bytes // bytes_per_row) // sub_align * sub_align)
    by_split = max(sub_align, (n_rows // 2) // sub_align * sub_align)
    tgb = int(min(by_size, by_split))
    steps = -(-n_rows // tgb)
    # If the step count is odd, grow tiles until it becomes even (steps strictly
    # decreases each pass, so this terminates; worst-case tile growth is 1.5x).
    while steps > 1 and steps % 2 == 1:
        steps -= 1
        tgb = -(-n_rows // steps)
        tgb = min(n_rows, -(-tgb // sub_align) * sub_align)
        steps = -(-n_rows // tgb)
    return tgb


def membrane_output(x, n_steps=N_STEPS):
    """x: (N, C, H, W, T) -> (N, C, H, W); out = sum_t x[..., t] * 0.8**(n_steps-1-t)."""
    N, C, H, Wd, T = x.shape
    assert T <= n_steps, "more timesteps than registered coefficients"

    if x.dtype not in (jnp.float32, jnp.bfloat16):
        x = x.astype(jnp.float32)
    in_dtype = x.dtype
    use_bf16 = in_dtype == jnp.bfloat16
    kernel = _membrane_kernel_bf16 if use_bf16 else _membrane_kernel_f32

    M = N * C * H * Wd
    # Matches PyTorch's self.coef[..., :T]: the T *largest* exponents.
    coef_np = make_coef(n_steps)[:T]
    coef_f32 = jnp.asarray(coef_np)

    itemsize = jnp.dtype(in_dtype).itemsize
    sub_align = max(8, 32 // itemsize)          # 8 sublanes for f32, 16 for bf16

    G = M // LANES                              # full 128-pixel groups -> kernel
    rem = M - G * LANES                         # ragged tail (<128 px) -> plain JAX

    if G == 0:
        # Smaller than one vreg row -- not worth a kernel launch.
        out = jnp.sum(x.astype(jnp.float32) * coef_f32, axis=-1).astype(in_dtype)
        return out

    K = LANES * T
    if rem == 0:
        x2 = x.reshape(G, K)                    # metadata-only reshape (contiguous)
        x_tail = None
    else:
        # TODO(synk): a masked last tile inside the kernel would avoid materializing
        # this head slice in the (rare) ragged case; the tail itself is <4 KiB.
        flat = x.reshape(M * T)
        x2 = flat[: G * K].reshape(G, K)
        x_tail = flat[G * K:].reshape(rem, T)

    w_hi, w_lo = _make_selection_weights(coef_np)   # compile-time constants (bf16)

    tgb = _pick_block_rows(G, K * itemsize, sub_align)
    grid = (int(-(-G // tgb)),)

    # VMEM budget from the actual double-buffered footprint (+ headroom for the
    # in-kernel bf16 hi/lo split and matmul partials).
    w_bytes = 2 * K * LANES * 2                       # two bf16 weight matrices
    in_block = tgb * K * itemsize
    out_block = tgb * LANES * itemsize
    footprint = 2 * (w_bytes + in_block + out_block) + in_block + 3 * tgb * LANES * 4
    vmem_limit = int(min(48 * 1024 * 1024,
                         max(footprint + footprint // 2, 16 * 1024 * 1024)))

    cost = pl.CostEstimate(
        flops=2 * M * T,                              # useful flops of the weighted sum
        transcendentals=0,
        bytes_accessed=int(G * K * itemsize + G * LANES * itemsize + w_bytes),
    )

    out = pl.pallas_call(
        kernel,
        out_shape=jax.ShapeDtypeStruct((G, LANES), in_dtype),
        grid=grid,
        in_specs=[
            pl.BlockSpec((K, LANES), lambda i: (0, 0)),   # w_hi: fetched once
            pl.BlockSpec((K, LANES), lambda i: (0, 0)),   # w_lo: fetched once
            pl.BlockSpec((tgb, K), lambda i: (i, 0)),     # x tile: full-width DMA
        ],
        out_specs=pl.BlockSpec((tgb, LANES), lambda i: (i, 0)),
        compiler_params=pltpu.CompilerParams(
            dimension_semantics=("parallel",),
            vmem_limit_bytes=vmem_limit,
        ),
        cost_estimate=cost,
    )(w_hi, w_lo, x2)

    out = out.reshape(G * LANES)
    if rem:
        tail = (x_tail.astype(jnp.float32) @ coef_f32).astype(in_dtype)
        out = jnp.concatenate([out, tail])
    return out.reshape(N, C, H, Wd)


if __name__ == "__main__":
    key = jax.random.PRNGKey(0)
    N, C, H, Wd, T = 2, 4, 16, 16, N_STEPS
    x = jax.random.normal(key, (N, C, H, Wd, T), dtype=jnp.float32)

    out = jax.block_until_ready(membrane_output(x, N_STEPS))

    # Pure-JAX reference (same semantics as the PyTorch forward).
    coef = jnp.asarray(make_coef(N_STEPS))[:T]
    ref = jnp.sum(x * coef, axis=-1)

    assert out.shape == (N, C, H, Wd)
    err = float(jnp.max(jnp.abs(out - ref)))
    assert jnp.allclose(out, ref, atol=1e-4, rtol=1e-4), err
    print("KERNEL_OK")
</pallas_src>

<mosaic_0001>
module attributes {stable_mosaic.version = 11 : i64} {
  func.func @_membrane_kernel_f32(%arg0: i32, %arg1: memref<1024x128xbf16, #tpu.memory_space<vmem>>, %arg2: memref<1024x128xbf16, #tpu.memory_space<vmem>>, %arg3: memref<8x1024xf32, #tpu.memory_space<vmem>>, %arg4: memref<8x128xf32, #tpu.memory_space<vmem>>) attributes {dimension_semantics = [#tpu.dimension_semantics<parallel>], iteration_bounds = array<i64: 2>, scalar_prefetch = 0 : i64, scratch_operands = 0 : i64, tpu.core_type = #tpu.core_type<tc>, window_params = [{pipeline_mode = #tpu.pipeline_mode<synchronous>, transform_indices = @transform_0, window_bounds = array<i64: 1024, 128>}, {pipeline_mode = #tpu.pipeline_mode<synchronous>, transform_indices = @transform_1, window_bounds = array<i64: 1024, 128>}, {transform_indices = @transform_2, window_bounds = array<i64: 8, 1024>}, {transform_indices = @transform_3, window_bounds = array<i64: 8, 128>}]} {
    %c0 = arith.constant 0 : index
    %c0_0 = arith.constant 0 : index
    %0 = vector.load %arg3[%c0, %c0_0] : memref<8x1024xf32, #tpu.memory_space<vmem>>, vector<8x1024xf32>
    %1 = arith.truncf %0 : vector<8x1024xf32> to vector<8x1024xbf16>
    %2 = arith.extf %1 : vector<8x1024xbf16> to vector<8x1024xf32>
    %3 = arith.subf %0, %2 : vector<8x1024xf32>
    %4 = arith.truncf %3 : vector<8x1024xf32> to vector<8x1024xbf16>
    %c0_1 = arith.constant 0 : index
    %c0_2 = arith.constant 0 : index
    %5 = vector.load %arg1[%c0_1, %c0_2] : memref<1024x128xbf16, #tpu.memory_space<vmem>>, vector<1024x128xbf16>
    %cst = arith.constant dense<0.000000e+00> : vector<8x128xf32>
    %6 = tpu.matmul %1, %5, %cst {dimension_numbers = #tpu.dot_dimension_numbers<[1], [0], [0], [1], [0, 0, 1, 1], [], []>} : vector<8x1024xbf16>, vector<1024x128xbf16>, vector<8x128xf32> -> vector<8x128xf32>
    %cst_3 = arith.constant dense<0.000000e+00> : vector<8x128xf32>
    %7 = tpu.matmul %4, %5, %cst_3 {dimension_numbers = #tpu.dot_dimension_numbers<[1], [0], [0], [1], [0, 0, 1, 1], [], []>} : vector<8x1024xbf16>, vector<1024x128xbf16>, vector<8x128xf32> -> vector<8x128xf32>
    %8 = arith.addf %6, %7 : vector<8x128xf32>
    %c0_4 = arith.constant 0 : index
    %c0_5 = arith.constant 0 : index
    %9 = vector.load %arg2[%c0_4, %c0_5] : memref<1024x128xbf16, #tpu.memory_space<vmem>>, vector<1024x128xbf16>
    %cst_6 = arith.constant dense<0.000000e+00> : vector<8x128xf32>
    %10 = tpu.matmul %1, %9, %cst_6 {dimension_numbers = #tpu.dot_dimension_numbers<[1], [0], [0], [1], [0, 0, 1, 1], [], []>} : vector<8x1024xbf16>, vector<1024x128xbf16>, vector<8x128xf32> -> vector<8x128xf32>
    %11 = arith.addf %8, %10 : vector<8x128xf32>
    %c0_7 = arith.constant 0 : index
    %c0_8 = arith.constant 0 : index
    %12 = vector.load %arg4[%c0_7, %c0_8] : memref<8x128xf32, #tpu.memory_space<vmem>>, vector<8x128xf32>
    tpu.vector_store %arg4[%c0_7, %c0_8], %11 {strides = array<i32>} : memref<8x128xf32, #tpu.memory_space<vmem>>, vector<8x128xf32>,
    return
  }
  func.func @transform_0(%arg0: i32) -> (i32, i32) {
    %c0_i32 = arith.constant 0 : i32
    %c0_i32_0 = arith.constant 0 : i32
    %c0_i32_1 = arith.constant 0 : i32
    return %c0_i32, %c0_i32_0 : i32, i32
  }
  func.func @transform_1(%arg0: i32) -> (i32, i32) {
    %c0_i32 = arith.constant 0 : i32
    %c0_i32_0 = arith.constant 0 : i32
    %c0_i32_1 = arith.constant 0 : i32
    return %c0_i32, %c0_i32_0 : i32, i32
  }
  func.func @transform_2(%arg0: i32) -> (i32, i32) {
    %c0_i32 = arith.constant 0 : i32
    %c0_i32_0 = arith.constant 0 : i32
    return %arg0, %c0_i32 : i32, i32
  }
  func.func @transform_3(%arg0: i32) -> (i32, i32) {
    %c0_i32 = arith.constant 0 : i32
    %c0_i32_0 = arith.constant 0 : i32
    return %arg0, %c0_i32 : i32, i32
  }
}

</mosaic_0001>

<llo_original>
// kernel: tpu_custom_call.1
$region0: #{tpu_custom_call.1}
  #allocation0 [shape = 'u32[]', space=smem, size = 0x4, offset = 0x4, fixed_abs, tag = 'smem constant byte address 0x4 - core index']
  #allocation1 [shape = 'u32[144,128]{1,0:T(1,128)}', space=vmem, size = 0x12000, scoped, tag = 'internal scratch']
  %s0 = inlined_call_operand.hbm [shape: bf16[1024,128], index: 0, kind: input, shape index: {}]
  %s1 = inlined_call_operand.hbm [shape: bf16[1024,128], index: 1, kind: input, shape index: {}]
  %s2 = inlined_call_operand.hbm [shape: f32[16,1024], index: 2, kind: input, shape index: {}]
  %s3 = inlined_call_operand.hbm [shape: f32[16,128], index: 3, kind: output, shape index: {}]
  %s4 = sld [smem:[#allocation0]]
  $region57: #{tpu_custom_call.1} parent=0
    _
  %s6 = ssub.s32 1, %s4
  %s7 = scalar_select 0, %s6, %s4
  $region1: #{tpu_custom_call.1} parent=0
    #allocation2 [shape = 'u8[262144]{0}', space=vmem, size = 0x40000, scoped, tag = 'input window, operand 0, single buffered']
    #allocation3 [shape = 's32[2]{0}', space=sflag, size = 0x8, scoped, tag = 'scoped memory for tpu_custom_call.1']
    #allocation4 [shape = 's32[2]{0}', space=sflag, size = 0x8, scoped, tag = 'scoped memory for tpu_custom_call.1']
    #allocation5 [shape = 'u8[262144]{0}', space=vmem, size = 0x40000, scoped, tag = 'input window, operand 1, single buffered']
    #allocation6 [shape = 's32[1]{0}', space=sflag, size = 0x4, scoped, tag = 'scoped memory for tpu_custom_call.1']
    #allocation7 [shape = 'u8[65536]{0}', space=vmem, size = 0x10000, scoped, tag = 'input window, operand 2']
    #allocation8 [shape = 'u8[8192]{0}', space=vmem, size = 0x2000, scoped, tag = 'output window, operand 0']
    %8 = vsyncpa [#allocation3], 0
    %9 = vsyncpa [#allocation6], 0
    %10 = vsyncpa [#allocation4], 0
    %s11 = scalar_lea.sflag [#allocation4], 1
    %12 = vsyncpa %s11, 0
    loop: start=0, step=1, limit=4
    $region2: #{tpu_custom_call.1} parent=1 // loop_pre_header
      _
    $region3: #{tpu_custom_call.1} parent=1 // loop_header
      %s14 = sphi 0, %s18
      %p15 = scmp.ge.s32.totalorder %s14, 4
      %s22 = sphi 0, %s22
      %s24 = sphi 0, %s22
      %s25 = sphi 0, %s24
      %s39 = sphi 0, %s25
      %s43 = sphi 0, %s43
      %s45 = sphi 0, %s43
      %s46 = sphi 0, %s45
      %s60 = sphi 0, %s46
      %s66 = sphi 0, %s68
      %s69 = sphi 0, %s66
      %s70 = sphi 0, %s69
      %s86 = sphi 0, %s70
      %s92 = sphi 0, %s94
      %s95 = sphi 0, %s92
      %s96 = sphi 0, %s95
      %s112 = sphi 0, %s96
    $region4: #{tpu_custom_call.1} parent=1 // loop_header_branch
      %17 = sbr.rel (%p15) target = $region8
    $region5: #{tpu_custom_call.1} parent=1 // loop_body
      %s19 = ssub.s32 %s14, 1
      %s20 = ssub.s32 %s14, 2
      %s21 = sadd.s32 %s14, 1
      %s23 = sadd.s32 %s22, 1
      %p26 = scmp.eq.s32.totalorder %s14, 1
      %p27 = scmp.ne.s32.totalorder %s22, %s24
      %p28 = scmp.eq.s32.totalorder %s14, 0
      %p29 = por %p27, %p28
      %p30 = scmp.ne.s32.totalorder %s22, %s24
      %p31 = scmp.eq.s32.totalorder %s19, 1
      %p32 = por %p30, %p31
      %p33 = scmp.ne.s32.totalorder %s24, %s25
      %p34 = scmp.eq.s32.totalorder %s19, 0
      %p35 = por %p33, %p34
      %p36 = scmp.ne.s32.totalorder %s24, %s25
      %p37 = scmp.eq.s32.totalorder %s20, 1
      %p38 = por %p36, %p37
      %p40 = scmp.ne.s32.totalorder %s25, %s39
      %p41 = scmp.eq.s32.totalorder %s20, 0
      %p42 = por %p40, %p41
      %s44 = sadd.s32 %s43, 1
      %p47 = scmp.eq.s32.totalorder %s14, 1
      %p48 = scmp.ne.s32.totalorder %s43, %s45
      %p49 = scmp.eq.s32.totalorder %s14, 0
      %p50 = por %p48, %p49
      %p51 = scmp.ne.s32.totalorder %s43, %s45
      %p52 = scmp.eq.s32.totalorder %s19, 1
      %p53 = por %p51, %p52
      %p54 = scmp.ne.s32.totalorder %s45, %s46
      %p55 = scmp.eq.s32.totalorder %s19, 0
      %p56 = por %p54, %p55
      %p57 = scmp.ne.s32.totalorder %s45, %s46
      %p58 = scmp.eq.s32.totalorder %s20, 1
      %p59 = por %p57, %p58
      %p61 = scmp.ne.s32.totalorder %s46, %s60
      %p62 = scmp.eq.s32.totalorder %s20, 0
      %p63 = por %p61, %p62
      %s64 = ssub.s32 %s14, %s21
      %p65 = scmp.eq.s32.totalorder %s64, 0
      %s67 = sadd.s32 %s66, 1
      %s68 = scalar_select %p65, %s66, %s67
      %p71 = pneg %p65
      %p72 = scmp.eq.s32.totalorder %s14, 1
      %p73 = por %p71, %p72
      %p74 = scmp.ne.s32.totalorder %s66, %s69
      %p75 = scmp.eq.s32.totalorder %s14, 0
      %p76 = por %p74, %p75
      %p77 = scmp.ne.s32.totalorder %s66, %s69
      %p78 = scmp.eq.s32.totalorder %s19, 1
      %p79 = por %p77, %p78
      %p80 = scmp.ne.s32.totalorder %s69, %s70
      %p81 = scmp.eq.s32.totalorder %s19, 0
      %p82 = por %p80, %p81
      %p83 = scmp.ne.s32.totalorder %s69, %s70
      %p84 = scmp.eq.s32.totalorder %s20, 1
      %p85 = por %p83, %p84
      %p87 = scmp.ne.s32.totalorder %s70, %s86
      %p88 = scmp.eq.s32.totalorder %s20, 0
      %p89 = por %p87, %p88
      %s90 = ssub.s32 %s14, %s21
      %p91 = scmp.eq.s32.totalorder %s90, 0
      %s93 = sadd.s32 %s92, 1
      %s94 = scalar_select %p91, %s92, %s93
      %p97 = pneg %p91
      %p98 = scmp.eq.s32.totalorder %s14, 1
      %p99 = por %p97, %p98
      %p100 = scmp.ne.s32.totalorder %s92, %s95
      %p101 = scmp.eq.s32.totalorder %s14, 0
      %p102 = por %p100, %p101
      %p103 = scmp.ne.s32.totalorder %s92, %s95
      %p104 = scmp.eq.s32.totalorder %s19, 1
      %p105 = por %p103, %p104
      %p106 = scmp.ne.s32.totalorder %s95, %s96
      %p107 = scmp.eq.s32.totalorder %s19, 0
      %p108 = por %p106, %p107
      %p109 = scmp.ne.s32.totalorder %s95, %s96
      %p110 = scmp.eq.s32.totalorder %s20, 1
      %p111 = por %p109, %p110
      %p113 = scmp.ne.s32.totalorder %s96, %s112
      %p114 = scmp.eq.s32.totalorder %s20, 0
      %p115 = por %p113, %p114
      %p116 = scmp.le.s32.totalorder 1, %s14
      %p117 = scmp.lt.s32.totalorder %s14, 3
      %p118 = pnand %p116, %p117
      %p119 = pneg %p118
      // Predicated region
      $region9: #{tpu_custom_call.1} parent=5 // pred_check
        _
      $region10: #{tpu_custom_call.1} parent=5 // pred_check_branch
        %121 = sbr.rel (%p118) target = $region12
      $region11: #{tpu_custom_call.1} parent=5 // pred_region
        %s122 = ssub.s32 %s14, 1
        // Predicated region
        $region13: #{tpu_custom_call.1} parent=11 // pred_check
          %p123 = pneg %p35
        $region14: #{tpu_custom_call.1} parent=11 // pred_check_branch
          %125 = sbr.rel (%p123) target = $region16
        $region15: #{tpu_custom_call.1} parent=11 // pred_region
          %s127 = ssub.s32 8192, 8192
          %128 = vsyncadd [#allocation3], %s127
          %s129 = sshll.u32 [#allocation2], 4
          %s130 = int_to_ptr.vmem [resolvable:$true] %s129
          %135 = dma.hbm_to_vmem [thread:$0]  %s0, 8192, %s130, [#allocation3], 64, 64, 4
        $region16: #{tpu_custom_call.1} parent=11 // pred_fallthru
          _
        // Predicated region
        $region17: #{tpu_custom_call.1} parent=11 // pred_check
          %p136 = pneg %p56
        $region18: #{tpu_custom_call.1} parent=11 // pred_check_branch
          %138 = sbr.rel (%p136) target = $region20
        $region19: #{tpu_custom_call.1} parent=11 // pred_region
          %s140 = ssub.s32 8192, 8192
          %141 = vsyncadd [#allocation6], %s140
          %s142 = sshll.u32 [#allocation5], 4
          %s143 = int_to_ptr.vmem [resolvable:$true] %s142
          %148 = dma.hbm_to_vmem [thread:$0]  %s1, 8192, %s143, [#allocation6], 64, 64, 4
        $region20: #{tpu_custom_call.1} parent=11 // pred_fallthru
          _
      $region12: #{tpu_custom_call.1} parent=5 // pred_fallthru
        _
      %p149 = scmp.lt.s32.totalorder %s14, 2
      // Predicated region
      $region21: #{tpu_custom_call.1} parent=5 // pred_check
        %p150 = pneg %p149
      $region22: #{tpu_custom_call.1} parent=5 // pred_check_branch
        %152 = sbr.rel (%p150) target = $region24
      $region23: #{tpu_custom_call.1} parent=5 // pred_region
        // Predicated region
        $region25: #{tpu_custom_call.1} parent=23 // pred_check
          %p153 = pneg %p76
        $region26: #{tpu_custom_call.1} parent=23 // pred_check_branch
          %155 = sbr.rel (%p153) target = $region28
        $region27: #{tpu_custom_call.1} parent=23 // pred_region
          %s156 = sand.u32 %s14, 1
          %s157 = scalar_lea.sflag [#allocation3], %s156
          %s158 = sand.u32 %s66, 1
          %s159 = smul.addr %s158, 64
          %s160 = scalar_lea.vmem [#allocation7], %s159
          %s162 = ssub.s32 1024, 1024
          %163 = vsyncadd %s157, %s162
          %s164 = smul.addr %s14, 8
          %s165 = smul.addr %s164, 128
          %s166 = scalar_lea.hbm %s2, %s165
          %s168 = sshll.u32 %s160, 4
          %s169 = int_to_ptr.vmem [resolvable:$true] %s168
          %171 = dma.hbm_to_vmem [thread:$0]  %s166, 1024, %s169, %s157
        $region28: #{tpu_custom_call.1} parent=23 // pred_fallthru
          _
      $region24: #{tpu_custom_call.1} parent=5 // pred_fallthru
        _
      %p172 = scmp.le.s32.totalorder 1, %s14
      %p173 = scmp.lt.s32.totalorder %s14, 3
      %p174 = pnand %p172, %p173
      %p175 = pneg %p174
      // Predicated region
      $region29: #{tpu_custom_call.1} parent=5 // pred_check
        _
      $region30: #{tpu_custom_call.1} parent=5 // pred_check_branch
        %177 = sbr.rel (%p174) target = $region32
      $region31: #{tpu_custom_call.1} parent=5 // pred_region
        %s178 = ssub.s32 %s14, 1
        // Predicated region
        $region33: #{tpu_custom_call.1} parent=31 // pred_check
          %p179 = pneg %p35
        $region34: #{tpu_custom_call.1} parent=31 // pred_check_branch
          %181 = sbr.rel (%p179) target = $region36
        $region35: #{tpu_custom_call.1} parent=31 // pred_region
          %182 = dma.done [#allocation3], 8192
        $region36: #{tpu_custom_call.1} parent=31 // pred_fallthru
          _
        // Predicated region
        $region37: #{tpu_custom_call.1} parent=31 // pred_check
          %p183 = pneg %p56
        $region38: #{tpu_custom_call.1} parent=31 // pred_check_branch
          %185 = sbr.rel (%p183) target = $region40
        $region39: #{tpu_custom_call.1} parent=31 // pred_region
          %186 = dma.done [#allocation6], 8192
        $region40: #{tpu_custom_call.1} parent=31 // pred_fallthru
          _
        %s187 = sand.u32 %s19, 1
        %s188 = scalar_lea.sflag [#allocation3], %s187
        %s189 = sand.u32 %s69, 1
        %s190 = smul.addr %s189, 64
        %s191 = scalar_lea.vmem [#allocation7], %s190
        // Predicated region
        $region41: #{tpu_custom_call.1} parent=31 // pred_check
          %p192 = pneg %p82
        $region42: #{tpu_custom_call.1} parent=31 // pred_check_branch
          %194 = sbr.rel (%p192) target = $region44
        $region43: #{tpu_custom_call.1} parent=31 // pred_region
          %195 = dma.done %s188, 1024
        $region44: #{tpu_custom_call.1} parent=31 // pred_fallthru
          _
        %p196 = pneg %p35
        %p197 = pneg %p32
        %p198 = pneg %p56
        %p199 = pneg %p53
        %s200 = sand.u32 %s19, 1
        %s201 = scalar_lea.sflag [#allocation3], %s200
        %s202 = sand.u32 %s69, 1
        %s203 = smul.addr %s202, 64
        %s204 = scalar_lea.vmem [#allocation7], %s203
        %p205 = pneg %p82
        %p206 = pneg %p79
        %p207 = pneg %p108
        %p208 = pneg %p105
        %s209 = sand.u32 %s95, 1
        %s210 = scalar_lea.sflag [#allocation4], %s209
        %s211 = sand.u32 %s95, 1
        %s212 = smul.addr %s211, 8
        %s213 = scalar_lea.vmem [#allocation8], %s212
        %v215 = vld [vmem:[%s191] sm:$0xff]
        %v216 = vld [vmem:[%s191 + $0x8] sm:$0xff]
        %v217 = vld [vmem:[%s191 + $0x10] sm:$0xff]
        %v218 = vld [vmem:[%s191 + $0x18] sm:$0xff]
        %v219 = vld [vmem:[%s191 + $0x20] sm:$0xff]
        %v220 = vld [vmem:[%s191 + $0x28] sm:$0xff]
        %v221 = vld [vmem:[%s191 + $0x30] sm:$0xff]
        %v222 = vld [vmem:[%s191 + $0x38] sm:$0xff]
        %v223 = vpack.c.bf16 %v215, %v215
        %v224 = vpack.c.bf16 %v216, %v216
        %v225 = vpack.c.bf16 %v217, %v217
        %v226 = vpack.c.bf16 %v218, %v218
        %v227 = vpack.c.bf16 %v219, %v219
        %v228 = vpack.c.bf16 %v220, %v220
        %v229 = vpack.c.bf16 %v221, %v221
        %v230 = vpack.c.bf16 %v222, %v222
        %v231 = vunpack.c.l.bf16 %v223
        %v232 = vunpack.c.l.bf16 %v224
        %v233 = vunpack.c.l.bf16 %v225
        %v234 = vunpack.c.l.bf16 %v226
        %v235 = vunpack.c.l.bf16 %v227
        %v236 = vunpack.c.l.bf16 %v228
        %v237 = vunpack.c.l.bf16 %v229
        %v238 = vunpack.c.l.bf16 %v230
        %v239 = vsub.f32 %v215, %v231
        %v240 = vsub.f32 %v216, %v232
        %v241 = vsub.f32 %v217, %v233
        %v242 = vsub.f32 %v218, %v234
        %v243 = vsub.f32 %v219, %v235
        %v244 = vsub.f32 %v220, %v236
        %v245 = vsub.f32 %v221, %v237
        %v246 = vsub.f32 %v222, %v238
        %v247 = vpack.c.bf16 %v239, %v239
        %v248 = vpack.c.bf16 %v240, %v240
        %v249 = vpack.c.bf16 %v241, %v241
        %v250 = vpack.c.bf16 %v242, %v242
        %v251 = vpack.c.bf16 %v243, %v243
        %v252 = vpack.c.bf16 %v244, %v244
        %v253 = vpack.c.bf16 %v245, %v245
        %v254 = vpack.c.bf16 %v246, %v246
        %v255 = vld [vmem:[#allocation2] sm:$0xf]
        %v256 = vld [vmem:[#allocation2 + $0x4] sm:$0xf]
        %v257 = vld [vmem:[#allocation2 + $0x8] sm:$0xf]
        %v258 = vld [vmem:[#allocation2 + $0xc] sm:$0xf]
        %v259 = vld [vmem:[#allocation2 + $0x10] sm:$0xf]
        %v260 = vld [vmem:[#allocation2 + $0x14] sm:$0xf]
        %v261 = vld [vmem:[#allocation2 + $0x18] sm:$0xf]
        %v262 = vld [vmem:[#allocation2 + $0x1c] sm:$0xf]
        %v263 = vld [vmem:[#allocation2 + $0x20] sm:$0xf]
        %v264 = vld [vmem:[#allocation2 + $0x24] sm:$0xf]
        %v265 = vld [vmem:[#allocation2 + $0x28] sm:$0xf]
        %v266 = vld [vmem:[#allocation2 + $0x2c] sm:$0xf]
        %v267 = vld [vmem:[#allocation2 + $0x30] sm:$0xf]
        %v268 = vld [vmem:[#allocation2 + $0x34] sm:$0xf]
        %v269 = vld [vmem:[#allocation2 + $0x38] sm:$0xf]
        %v270 = vld [vmem:[#allocation2 + $0x3c] sm:$0xf]
        %v271 = vld [vmem:[#allocation2 + $0x40] sm:$0xf]
        %v272 = vld [vmem:[#allocation2 + $0x44] sm:$0xf]
        %v273 = vld [vmem:[#allocation2 + $0x48] sm:$0xf]
        %v274 = vld [vmem:[#allocation2 + $0x4c] sm:$0xf]
        %v275 = vld [vmem:[#allocation2 + $0x50] sm:$0xf]
        %v276 = vld [vmem:[#allocation2 + $0x54] sm:$0xf]
        %v277 = vld [vmem:[#allocation2 + $0x58] sm:$0xf]
        %v278 = vld [vmem:[#allocation2 + $0x5c] sm:$0xf]
        %v279 = vld [vmem:[#allocation2 + $0x60] sm:$0xf]
        %v280 = vld [vmem:[#allocation2 + $0x64] sm:$0xf]
        %v281 = vld [vmem:[#allocation2 + $0x68] sm:$0xf]
        %v282 = vld [vmem:[#allocation2 + $0x6c] sm:$0xf]
        %v283 = vld [vmem:[#allocation2 + $0x70] sm:$0xf]
        %v284 = vld [vmem:[#allocation2 + $0x74] sm:$0xf]
        %v285 = vld [vmem:[#allocation2 + $0x78] sm:$0xf]
        %v286 = vld [vmem:[#allocation2 + $0x7c] sm:$0xf]
        %v287 = vld [vmem:[#allocation2 + $0x80] sm:$0xf]
        %v288 = vld [vmem:[#allocation2 + $0x84] sm:$0xf]
        %v289 = vld [vmem:[#allocation2 + $0x88] sm:$0xf]
        %v290 = vld [vmem:[#allocation2 + $0x8c] sm:$0xf]
        %v291 = vld [vmem:[#allocation2 + $0x90] sm:$0xf]
        %v292 = vld [vmem:[#allocation2 + $0x94] sm:$0xf]
        %v293 = vld [vmem:[#allocation2 + $0x98] sm:$0xf]
        %v294 = vld [vmem:[#allocation2 + $0x9c] sm:$0xf]
        %v295 = vld [vmem:[#allocation2 + $0xa0] sm:$0xf]
        %v296 = vld [vmem:[#allocation2 + $0xa4] sm:$0xf]
        %v297 = vld [vmem:[#allocation2 + $0xa8] sm:$0xf]
        %v298 = vld [vmem:[#allocation2 + $0xac] sm:$0xf]
        %v299 = vld [vmem:[#allocation2 + $0xb0] sm:$0xf]
        %v300 = vld [vmem:[#allocation2 + $0xb4] sm:$0xf]
        %v301 = vld [vmem:[#allocation2 + $0xb8] sm:$0xf]
        %v302 = vld [vmem:[#allocation2 + $0xbc] sm:$0xf]
        %v303 = vld [vmem:[#allocation2 + $0xc0] sm:$0xf]
        %v304 = vld [vmem:[#allocation2 + $0xc4] sm:$0xf]
        %v305 = vld [vmem:[#allocation2 + $0xc8] sm:$0xf]
        %v306 = vld [vmem:[#allocation2 + $0xcc] sm:$0xf]
        %v307 = vld [vmem:[#allocation2 + $0xd0] sm:$0xf]
        %v308 = vld [vmem:[#allocation2 + $0xd4] sm:$0xf]
        %v309 = vld [vmem:[#allocation2 + $0xd8] sm:$0xf]
        %v310 = vld [vmem:[#allocation2 + $0xdc] sm:$0xf]
        %v311 = vld [vmem:[#allocation2 + $0xe0] sm:$0xf]
        %v312 = vld [vmem:[#allocation2 + $0xe4] sm:$0xf]
        %v313 = vld [vmem:[#allocation2 + $0xe8] sm:$0xf]
        %v314 = vld [vmem:[#allocation2 + $0xec] sm:$0xf]
        %v315 = vld [vmem:[#allocation2 + $0xf0] sm:$0xf]
        %v316 = vld [vmem:[#allocation2 + $0xf4] sm:$0xf]
        %v317 = vld [vmem:[#allocation2 + $0xf8] sm:$0xf]
        %v318 = vld [vmem:[#allocation2 + $0xfc] sm:$0xf]
        %v319 = vld [vmem:[#allocation2 + $0x100] sm:$0xf]
        %v320 = vld [vmem:[#allocation2 + $0x104] sm:$0xf]
        %v321 = vld [vmem:[#allocation2 + $0x108] sm:$0xf]
        %v322 = vld [vmem:[#allocation2 + $0x10c] sm:$0xf]
        %v323 = vld [vmem:[#allocation2 + $0x110] sm:$0xf]
        %v324 = vld [vmem:[#allocation2 + $0x114] sm:$0xf]
        %v325 = vld [vmem:[#allocation2 + $0x118] sm:$0xf]
        %v326 = vld [vmem:[#allocation2 + $0x11c] sm:$0xf]
        %v327 = vld [vmem:[#allocation2 + $0x120] sm:$0xf]
        %v328 = vld [vmem:[#allocation2 + $0x124] sm:$0xf]
        %v329 = vld [vmem:[#allocation2 + $0x128] sm:$0xf]
        %v330 = vld [vmem:[#allocation2 + $0x12c] sm:$0xf]
        %v331 = vld [vmem:[#allocation2 + $0x130] sm:$0xf]
        %v332 = vld [vmem:[#allocation2 + $0x134] sm:$0xf]
        %v333 = vld [vmem:[#allocation2 + $0x138] sm:$0xf]
        %v334 = vld [vmem:[#allocation2 + $0x13c] sm:$0xf]
        %v335 = vld [vmem:[#allocation2 + $0x140] sm:$0xf]
        %v336 = vld [vmem:[#allocation2 + $0x144] sm:$0xf]
        %v337 = vld [vmem:[#allocation2 + $0x148] sm:$0xf]
        %v338 = vld [vmem:[#allocation2 + $0x14c] sm:$0xf]
        %v339 = vld [vmem:[#allocation2 + $0x150] sm:$0xf]
        %v340 = vld [vmem:[#allocation2 + $0x154] sm:$0xf]
        %v341 = vld [vmem:[#allocation2 + $0x158] sm:$0xf]
        %v342 = vld [vmem:[#allocation2 + $0x15c] sm:$0xf]
        %v343 = vld [vmem:[#allocation2 + $0x160] sm:$0xf]
        %v344 = vld [vmem:[#allocation2 + $0x164] sm:$0xf]
        %v345 = vld [vmem:[#allocation2 + $0x168] sm:$0xf]
        %v346 = vld [vmem:[#allocation2 + $0x16c] sm:$0xf]
        %v347 = vld [vmem:[#allocation2 + $0x170] sm:$0xf]
        %v348 = vld [vmem:[#allocation2 + $0x174] sm:$0xf]
        %v349 = vld [vmem:[#allocation2 + $0x178] sm:$0xf]
        %v350 = vld [vmem:[#allocation2 + $0x17c] sm:$0xf]
        %v351 = vld [vmem:[#allocation2 + $0x180] sm:$0xf]
        %v352 = vld [vmem:[#allocation2 + $0x184] sm:$0xf]
        %v353 = vld [vmem:[#allocation2 + $0x188] sm:$0xf]
        %v354 = vld [vmem:[#allocation2 + $0x18c] sm:$0xf]
        %v355 = vld [vmem:[#allocation2 + $0x190] sm:$0xf]
        %v356 = vld [vmem:[#allocation2 + $0x194] sm:$0xf]
        %v357 = vld [vmem:[#allocation2 + $0x198] sm:$0xf]
        %v358 = vld [vmem:[#allocation2 + $0x19c] sm:$0xf]
        %v359 = vld [vmem:[#allocation2 + $0x1a0] sm:$0xf]
        %v360 = vld [vmem:[#allocation2 + $0x1a4] sm:$0xf]
        %v361 = vld [vmem:[#allocation2 + $0x1a8] sm:$0xf]
        %v362 = vld [vmem:[#allocation2 + $0x1ac] sm:$0xf]
        %v363 = vld [vmem:[#allocation2 + $0x1b0] sm:$0xf]
        %v364 = vld [vmem:[#allocation2 + $0x1b4] sm:$0xf]
        %v365 = vld [vmem:[#allocation2 + $0x1b8] sm:$0xf]
        %v366 = vld [vmem:[#allocation2 + $0x1bc] sm:$0xf]
        %v367 = vld [vmem:[#allocation2 + $0x1c0] sm:$0xf]
        %v368 = vld [vmem:[#allocation2 + $0x1c4] sm:$0xf]
        %v369 = vld [vmem:[#allocation2 + $0x1c8] sm:$0xf]
        %v370 = vld [vmem:[#allocation2 + $0x1cc] sm:$0xf]
        %v371 = vld [vmem:[#allocation2 + $0x1d0] sm:$0xf]
        %v372 = vld [vmem:[#allocation2 + $0x1d4] sm:$0xf]
        %v373 = vld [vmem:[#allocation2 + $0x1d8] sm:$0xf]
        %v374 = vld [vmem:[#allocation2 + $0x1dc] sm:$0xf]
        %v375 = vld [vmem:[#allocation2 + $0x1e0] sm:$0xf]
        %v376 = vld [vmem:[#allocation2 + $0x1e4] sm:$0xf]
        %v377 = vld [vmem:[#allocation2 + $0x1e8] sm:$0xf]
        %v378 = vld [vmem:[#allocation2 + $0x1ec] sm:$0xf]
        %v379 = vld [vmem:[#allocation2 + $0x1f0] sm:$0xf]
        %v380 = vld [vmem:[#allocation2 + $0x1f4] sm:$0xf]
        %v381 = vld [vmem:[#allocation2 + $0x1f8] sm:$0xf]
        %v382 = vld [vmem:[#allocation2 + $0x1fc] sm:$0xf]
        %v511 = vunpack.c.l.b16 %v255
        %v512 = vunpack.c.l.b16 %v256
        %v513 = vunpack.c.l.b16 %v257
        %v514 = vunpack.c.l.b16 %v258
        %v515 = vunpack.c.l.b16 %v259
        %v516 = vunpack.c.l.b16 %v260
        %v517 = vunpack.c.l.b16 %v261
        %v518 = vunpack.c.l.b16 %v262
        %v519 = vunpack.c.l.b16 %v263
        %v520 = vunpack.c.l.b16 %v264
        %v521 = vunpack.c.l.b16 %v265
        %v522 = vunpack.c.l.b16 %v266
        %v523 = vunpack.c.l.b16 %v267
        %v524 = vunpack.c.l.b16 %v268
        %v525 = vunpack.c.l.b16 %v269
        %v526 = vunpack.c.l.b16 %v270
        %v527 = vunpack.c.l.b16 %v271
        %v528 = vunpack.c.l.b16 %v272
        %v529 = vunpack.c.l.b16 %v273
        %v530 = vunpack.c.l.b16 %v274
        %v531 = vunpack.c.l.b16 %v275
        %v532 = vunpack.c.l.b16 %v276
        %v533 = vunpack.c.l.b16 %v277
        %v534 = vunpack.c.l.b16 %v278
        %v535 = vunpack.c.l.b16 %v279
        %v536 = vunpack.c.l.b16 %v280
        %v537 = vunpack.c.l.b16 %v281
        %v538 = vunpack.c.l.b16 %v282
        %v539 = vunpack.c.l.b16 %v283
        %v540 = vunpack.c.l.b16 %v284
        %v541 = vunpack.c.l.b16 %v285
        %v542 = vunpack.c.l.b16 %v286
        %v543 = vunpack.c.l.b16 %v287
        %v544 = vunpack.c.l.b16 %v288
        %v545 = vunpack.c.l.b16 %v289
        %v546 = vunpack.c.l.b16 %v290
        %v547 = vunpack.c.l.b16 %v291
        %v548 = vunpack.c.l.b16 %v292
        %v549 = vunpack.c.l.b16 %v293
        %v550 = vunpack.c.l.b16 %v294
        %v551 = vunpack.c.l.b16 %v295
        %v552 = vunpack.c.l.b16 %v296
        %v553 = vunpack.c.l.b16 %v297
        %v554 = vunpack.c.l.b16 %v298
        %v555 = vunpack.c.l.b16 %v299
        %v556 = vunpack.c.l.b16 %v300
        %v557 = vunpack.c.l.b16 %v301
        %v558 = vunpack.c.l.b16 %v302
        %v559 = vunpack.c.l.b16 %v303
        %v560 = vunpack.c.l.b16 %v304
        %v561 = vunpack.c.l.b16 %v305
        %v562 = vunpack.c.l.b16 %v306
        %v563 = vunpack.c.l.b16 %v307
        %v564 = vunpack.c.l.b16 %v308
        %v565 = vunpack.c.l.b16 %v309
        %v566 = vunpack.c.l.b16 %v310
        %v567 = vunpack.c.l.b16 %v311
        %v568 = vunpack.c.l.b16 %v312
        %v569 = vunpack.c.l.b16 %v313
        %v570 = vunpack.c.l.b16 %v314
        %v571 = vunpack.c.l.b16 %v315
        %v572 = vunpack.c.l.b16 %v316
        %v573 = vunpack.c.l.b16 %v317
        %v574 = vunpack.c.l.b16 %v318
        %v575 = vunpack.c.l.b16 %v319
        %v576 = vunpack.c.l.b16 %v320
        %v577 = vunpack.c.l.b16 %v321
        %v578 = vunpack.c.l.b16 %v322
        %v579 = vunpack.c.l.b16 %v323
        %v580 = vunpack.c.l.b16 %v324
        %v581 = vunpack.c.l.b16 %v325
        %v582 = vunpack.c.l.b16 %v326
        %v583 = vunpack.c.l.b16 %v327
        %v584 = vunpack.c.l.b16 %v328
        %v585 = vunpack.c.l.b16 %v329
        %v586 = vunpack.c.l.b16 %v330
        %v587 = vunpack.c.l.b16 %v331
        %v588 = vunpack.c.l.b16 %v332
        %v589 = vunpack.c.l.b16 %v333
        %v590 = vunpack.c.l.b16 %v334
        %v591 = vunpack.c.l.b16 %v335
        %v592 = vunpack.c.l.b16 %v336
        %v593 = vunpack.c.l.b16 %v337
        %v594 = vunpack.c.l.b16 %v338
        %v595 = vunpack.c.l.b16 %v339
        %v596 = vunpack.c.l.b16 %v340
        %v597 = vunpack.c.l.b16 %v341
        %v598 = vunpack.c.l.b16 %v342
        %v599 = vunpack.c.l.b16 %v343
        %v600 = vunpack.c.l.b16 %v344
        %v601 = vunpack.c.l.b16 %v345
        %v602 = vunpack.c.l.b16 %v346
        %v603 = vunpack.c.l.b16 %v347
        %v604 = vunpack.c.l.b16 %v348
        %v605 = vunpack.c.l.b16 %v349
        %v606 = vunpack.c.l.b16 %v350
        %v607 = vunpack.c.l.b16 %v351
        %v608 = vunpack.c.l.b16 %v352
        %v609 = vunpack.c.l.b16 %v353
        %v610 = vunpack.c.l.b16 %v354
        %v611 = vunpack.c.l.b16 %v355
        %v612 = vunpack.c.l.b16 %v356
        %v613 = vunpack.c.l.b16 %v357
        %v614 = vunpack.c.l.b16 %v358
        %v615 = vunpack.c.l.b16 %v359
        %v616 = vunpack.c.l.b16 %v360
        %v617 = vunpack.c.l.b16 %v361
        %v618 = vunpack.c.l.b16 %v362
        %v619 = vunpack.c.l.b16 %v363
        %v620 = vunpack.c.l.b16 %v364
        %v621 = vunpack.c.l.b16 %v365
        %v622 = vunpack.c.l.b16 %v366
        %v623 = vunpack.c.l.b16 %v367
        %v624 = vunpack.c.l.b16 %v368
        %v625 = vunpack.c.l.b16 %v369
        %v626 = vunpack.c.l.b16 %v370
        %v627 = vunpack.c.l.b16 %v371
        %v628 = vunpack.c.l.b16 %v372
        %v629 = vunpack.c.l.b16 %v373
        %v630 = vunpack.c.l.b16 %v374
        %v631 = vunpack.c.l.b16 %v375
        %v632 = vunpack.c.l.b16 %v376
        %v633 = vunpack.c.l.b16 %v377
        %v634 = vunpack.c.l.b16 %v378
        %v635 = vunpack.c.l.b16 %v379
        %v636 = vunpack.c.l.b16 %v380
        %v637 = vunpack.c.l.b16 %v381
        %v638 = vunpack.c.l.b16 %v382
        %v639 = vpack.c.b16 %v512, %v511
        %v640 = vpack.c.b16 %v514, %v513
        %v641 = vpack.c.b16 %v516, %v515
        %v642 = vpack.c.b16 %v518, %v517
        %v643 = vpack.c.b16 %v520, %v519
        %v644 = vpack.c.b16 %v522, %v521
        %v645 = vpack.c.b16 %v524, %v523
        %v646 = vpack.c.b16 %v526, %v525
        %v647 = vpack.c.b16 %v528, %v527
        %v648 = vpack.c.b16 %v530, %v529
        %v649 = vpack.c.b16 %v532, %v531
        %v650 = vpack.c.b16 %v534, %v533
        %v651 = vpack.c.b16 %v536, %v535
        %v652 = vpack.c.b16 %v538, %v537
        %v653 = vpack.c.b16 %v540, %v539
        %v654 = vpack.c.b16 %v542, %v541
        %v655 = vpack.c.b16 %v544, %v543
        %v656 = vpack.c.b16 %v546, %v545
        %v657 = vpack.c.b16 %v548, %v547
        %v658 = vpack.c.b16 %v550, %v549
        %v659 = vpack.c.b16 %v552, %v551
        %v660 = vpack.c.b16 %v554, %v553
        %v661 = vpack.c.b16 %v556, %v555
        %v662 = vpack.c.b16 %v558, %v557
        %v663 = vpack.c.b16 %v560, %v559
        %v664 = vpack.c.b16 %v562, %v561
        %v665 = vpack.c.b16 %v564, %v563
        %v666 = vpack.c.b16 %v566, %v565
        %v667 = vpack.c.b16 %v568, %v567
        %v668 = vpack.c.b16 %v570, %v569
        %v669 = vpack.c.b16 %v572, %v571
        %v670 = vpack.c.b16 %v574, %v573
        %v671 = vpack.c.b16 %v576, %v575
        %v672 = vpack.c.b16 %v578, %v577
        %v673 = vpack.c.b16 %v580, %v579
        %v674 = vpack.c.b16 %v582, %v581
        %v675 = vpack.c.b16 %v584, %v583
        %v676 = vpack.c.b16 %v586, %v585
        %v677 = vpack.c.b16 %v588, %v587
        %v678 = vpack.c.b16 %v590, %v589
        %v679 = vpack.c.b16 %v592, %v591
        %v680 = vpack.c.b16 %v594, %v593
        %v681 = vpack.c.b16 %v596, %v595
        %v682 = vpack.c.b16 %v598, %v597
        %v683 = vpack.c.b16 %v600, %v599
        %v684 = vpack.c.b16 %v602, %v601
        %v685 = vpack.c.b16 %v604, %v603
        %v686 = vpack.c.b16 %v606, %v605
        %v687 = vpack.c.b16 %v608, %v607
        %v688 = vpack.c.b16 %v610, %v609
        %v689 = vpack.c.b16 %v612, %v611
        %v690 = vpack.c.b16 %v614, %v613
        %v691 = vpack.c.b16 %v616, %v615
        %v692 = vpack.c.b16 %v618, %v617
        %v693 = vpack.c.b16 %v620, %v619
        %v694 = vpack.c.b16 %v622, %v621
        %v695 = vpack.c.b16 %v624, %v623
        %v696 = vpack.c.b16 %v626, %v625
        %v697 = vpack.c.b16 %v628, %v627
        %v698 = vpack.c.b16 %v630, %v629
        %v699 = vpack.c.b16 %v632, %v631
        %v700 = vpack.c.b16 %v634, %v633
        %v701 = vpack.c.b16 %v636, %v635
        %v702 = vpack.c.b16 %v638, %v637
        %767 = vmatprep.subr.bf16.mxu0 0
        %768 = vmatpush1.bf16.msra.mxu0 %v639
        %769 = vmatprep.subr.bf16.mxu0 0
        %770 = vmatpush1.bf16.msra.mxu0 %v640
        %771 = vmatprep.subr.bf16.mxu0 0
        %772 = vmatpush1.bf16.msra.mxu0 %v641
        %773 = vmatprep.subr.bf16.mxu0 0
        %774 = vmatpush1.bf16.msra.mxu0 %v642
        %775 = vmatprep.subr.bf16.mxu0 0
        %776 = vmatpush1.bf16.msra.mxu0 %v643
        %777 = vmatprep.subr.bf16.mxu0 0
        %778 = vmatpush1.bf16.msra.mxu0 %v644
        %779 = vmatprep.subr.bf16.mxu0 0
        %780 = vmatpush1.bf16.msra.mxu0 %v645
        %781 = vmatprep.subr.bf16.mxu0 0
        %782 = vmatpush1.bf16.msra.mxu0 %v646
        %783 = vmatprep.subr.bf16.mxu0 0
        %784 = vmatpush1.bf16.msra.mxu0 %v647
        %785 = vmatprep.subr.bf16.mxu0 0
        %786 = vmatpush1.bf16.msra.mxu0 %v648
        %787 = vmatprep.subr.bf16.mxu0 0
        %788 = vmatpush1.bf16.msra.mxu0 %v649
        %789 = vmatprep.subr.bf16.mxu0 0
        %790 = vmatpush1.bf16.msra.mxu0 %v650
        %791 = vmatprep.subr.bf16.mxu0 0
        %792 = vmatpush1.bf16.msra.mxu0 %v651
        %793 = vmatprep.subr.bf16.mxu0 0
        %794 = vmatpush1.bf16.msra.mxu0 %v652
        %795 = vmatprep.subr.bf16.mxu0 0
        %796 = vmatpush1.bf16.msra.mxu0 %v653
        %797 = vmatprep.subr.bf16.mxu0 0
        %798 = vmatpush1.bf16.msra.mxu0 %v654
        %799 = vmatprep.mubr.bf16.mxu0 %v248
        %800 = vmatmul.mubr.bf16.gmra.mrb[0].mxu0 %v247
        %v801 = vpop.f32.mrb[0].mxu0
        %v802 = vadd.f32 0.0, %v801
        %v803 = vpop.f32.mrb[0].mxu0
        %v804 = vpop.f32.mrb[0].mxu0
        %v805 = vpop.f32.mrb[0].mxu0
        %806 = vdwg.mxu0
        %807 = vmatprep.subr.bf16.mxu0 0
        %808 = vmatpush1.bf16.msra.mxu0 %v655
        %809 = vmatprep.subr.bf16.mxu0 0
        %810 = vmatpush1.bf16.msra.mxu0 %v656
        %811 = vmatprep.subr.bf16.mxu0 0
        %812 = vmatpush1.bf16.msra.mxu0 %v657
        %813 = vmatprep.subr.bf16.mxu0 0
        %814 = vmatpush1.bf16.msra.mxu0 %v658
        %815 = vmatprep.subr.bf16.mxu0 0
        %816 = vmatpush1.bf16.msra.mxu0 %v659
        %817 = vmatprep.subr.bf16.mxu0 0
        %818 = vmatpush1.bf16.msra.mxu0 %v660
        %819 = vmatprep.subr.bf16.mxu0 0
        %820 = vmatpush1.bf16.msra.mxu0 %v661
        %821 = vmatprep.subr.bf16.mxu0 0
        %822 = vmatpush1.bf16.msra.mxu0 %v662
        %823 = vmatprep.subr.bf16.mxu0 0
        %824 = vmatpush1.bf16.msra.mxu0 %v663
        %825 = vmatprep.subr.bf16.mxu0 0
        %826 = vmatpush1.bf16.msra.mxu0 %v664
        %827 = vmatprep.subr.bf16.mxu0 0
        %828 = vmatpush1.bf16.msra.mxu0 %v665
        %829 = vmatprep.subr.bf16.mxu0 0
        %830 = vmatpush1.bf16.msra.mxu0 %v666
        %831 = vmatprep.subr.bf16.mxu0 0
        %832 = vmatpush1.bf16.msra.mxu0 %v667
        %833 = vmatprep.subr.bf16.mxu0 0
        %834 = vmatpush1.bf16.msra.mxu0 %v668
        %835 = vmatprep.subr.bf16.mxu0 0
        %836 = vmatpush1.bf16.msra.mxu0 %v669
        %837 = vmatprep.subr.bf16.mxu0 0
        %838 = vmatpush1.bf16.msra.mxu0 %v670
        %839 = vmatprep.mubr.bf16.mxu0 %v250
        %840 = vmatmul.mubr.bf16.gmra.mrb[0].mxu0 %v249
        %v841 = vpop.f32.mrb[0].mxu0
        %v842 = vadd.f32 %v802, %v841
        %v843 = vpop.f32.mrb[0].mxu0
        %v844 = vpop.f32.mrb[0].mxu0
        %v845 = vpop.f32.mrb[0].mxu0
        %846 = vdwg.mxu0
        %847 = vmatprep.subr.bf16.mxu0 0
        %848 = vmatpush1.bf16.msra.mxu0 %v671
        %849 = vmatprep.subr.bf16.mxu0 0
        %850 = vmatpush1.bf16.msra.mxu0 %v672
        %851 = vmatprep.subr.bf16.mxu0 0
        %852 = vmatpush1.bf16.msra.mxu0 %v673
        %853 = vmatprep.subr.bf16.mxu0 0
        %854 = vmatpush1.bf16.msra.mxu0 %v674
        %855 = vmatprep.subr.bf16.mxu0 0
        %856 = vmatpush1.bf16.msra.mxu0 %v675
        %857 = vmatprep.subr.bf16.mxu0 0
        %858 = vmatpush1.bf16.msra.mxu0 %v676
        %859 = vmatprep.subr.bf16.mxu0 0
        %860 = vmatpush1.bf16.msra.mxu0 %v677
        %861 = vmatprep.subr.bf16.mxu0 0
        %862 = vmatpush1.bf16.msra.mxu0 %v678
        %863 = vmatprep.subr.bf16.mxu0 0
        %864 = vmatpush1.bf16.msra.mxu0 %v679
        %865 = vmatprep.subr.bf16.mxu0 0
        %866 = vmatpush1.bf16.msra.mxu0 %v680
        %867 = vmatprep.subr.bf16.mxu0 0
        %868 = vmatpush1.bf16.msra.mxu0 %v681
        %869 = vmatprep.subr.bf16.mxu0 0
        %870 = vmatpush1.bf16.msra.mxu0 %v682
        %871 = vmatprep.subr.bf16.mxu0 0
        %872 = vmatpush1.bf16.msra.mxu0 %v683
        %873 = vmatprep.subr.bf16.mxu0 0
        %874 = vmatpush1.bf16.msra.mxu0 %v684
        %875 = vmatprep.subr.bf16.mxu0 0
        %876 = vmatpush1.bf16.msra.mxu0 %v685
        %877 = vmatprep.subr.bf16.mxu0 0
        %878 = vmatpush1.bf16.msra.mxu0 %v686
        %879 = vmatprep.mubr.bf16.mxu0 %v252
        %880 = vmatmul.mubr.bf16.gmra.mrb[0].mxu0 %v251
        %v881 = vpop.f32.mrb[0].mxu0
        %v882 = vadd.f32 %v842, %v881
        %v883 = vpop.f32.mrb[0].mxu0
        %v884 = vpop.f32.mrb[0].mxu0
        %v885 = vpop.f32.mrb[0].mxu0
        %886 = vdwg.mxu0
        %887 = vmatprep.subr.bf16.mxu0 0
        %888 = vmatpush1.bf16.msra.mxu0 %v687
        %889 = vmatprep.subr.bf16.mxu0 0
        %890 = vmatpush1.bf16.msra.mxu0 %v688
        %891 = vmatprep.subr.bf16.mxu0 0
        %892 = vmatpush1.bf16.msra.mxu0 %v689
        %893 = vmatprep.subr.bf16.mxu0 0
        %894 = vmatpush1.bf16.msra.mxu0 %v690
        %895 = vmatprep.subr.bf16.mxu0 0
        %896 = vmatpush1.bf16.msra.mxu0 %v691
        %897 = vmatprep.subr.bf16.mxu0 0
        %898 = vmatpush1.bf16.msra.mxu0 %v692
        %899 = vmatprep.subr.bf16.mxu0 0
        %900 = vmatpush1.bf16.msra.mxu0 %v693
        %901 = vmatprep.subr.bf16.mxu0 0
        %902 = vmatpush1.bf16.msra.mxu0 %v694
        %903 = vmatprep.subr.bf16.mxu0 0
        %904 = vmatpush1.bf16.msra.mxu0 %v695
        %905 = vmatprep.subr.bf16.mxu0 0
        %906 = vmatpush1.bf16.msra.mxu0 %v696
        %907 = vmatprep.subr.bf16.mxu0 0
        %908 = vmatpush1.bf16.msra.mxu0 %v697
        %909 = vmatprep.subr.bf16.mxu0 0
        %910 = vmatpush1.bf16.msra.mxu0 %v698
        %911 = vmatprep.subr.bf16.mxu0 0
        %912 = vmatpush1.bf16.msra.mxu0 %v699
        %913 = vmatprep.subr.bf16.mxu0 0
        %914 = vmatpush1.bf16.msra.mxu0 %v700
        %915 = vmatprep.subr.bf16.mxu0 0
        %916 = vmatpush1.bf16.msra.mxu0 %v701
        %917 = vmatprep.subr.bf16.mxu0 0
        %918 = vmatpush1.bf16.msra.mxu0 %v702
        %919 = vmatprep.mubr.bf16.mxu0 %v254
        %920 = vmatmul.mubr.bf16.gmra.mrb[0].mxu0 %v253
        %v921 = vpop.f32.mrb[0].mxu0
        %v922 = vadd.f32 %v882, %v921
        %v923 = vpop.f32.mrb[0].mxu0
        %v924 = vpop.f32.mrb[0].mxu0
        %v925 = vpop.f32.mrb[0].mxu0
        %926 = vdwg.mxu0
        %927 = vmatprep.subr.bf16.mxu0 0
        %928 = vmatpush1.bf16.msra.mxu0 %v639
        %929 = vmatprep.subr.bf16.mxu0 0
        %930 = vmatpush1.bf16.msra.mxu0 %v640
        %931 = vmatprep.subr.bf16.mxu0 0
        %932 = vmatpush1.bf16.msra.mxu0 %v641
        %933 = vmatprep.subr.bf16.mxu0 0
        %934 = vmatpush1.bf16.msra.mxu0 %v642
        %935 = vmatprep.subr.bf16.mxu0 0
        %936 = vmatpush1.bf16.msra.mxu0 %v643
        %937 = vmatprep.subr.bf16.mxu0 0
        %938 = vmatpush1.bf16.msra.mxu0 %v644
        %939 = vmatprep.subr.bf16.mxu0 0
        %940 = vmatpush1.bf16.msra.mxu0 %v645
        %941 = vmatprep.subr.bf16.mxu0 0
        %942 = vmatpush1.bf16.msra.mxu0 %v646
        %943 = vmatprep.subr.bf16.mxu0 0
        %944 = vmatpush1.bf16.msra.mxu0 %v647
        %945 = vmatprep.subr.bf16.mxu0 0
        %946 = vmatpush1.bf16.msra.mxu0 %v648
        %947 = vmatprep.subr.bf16.mxu0 0
        %948 = vmatpush1.bf16.msra.mxu0 %v649
        %949 = vmatprep.subr.bf16.mxu0 0
        %950 = vmatpush1.bf16.msra.mxu0 %v650
        %951 = vmatprep.subr.bf16.mxu0 0
        %952 = vmatpush1.bf16.msra.mxu0 %v651
        %953 = vmatprep.subr.bf16.mxu0 0
        %954 = vmatpush1.bf16.msra.mxu0 %v652
        %955 = vmatprep.subr.bf16.mxu0 0
        %956 = vmatpush1.bf16.msra.mxu0 %v653
        %957 = vmatprep.subr.bf16.mxu0 0
        %958 = vmatpush1.bf16.msra.mxu0 %v654
        %959 = vmatprep.mubr.bf16.mxu0 %v224
        %960 = vmatmul.mubr.bf16.gmra.mrb[0].mxu0 %v223
        %v961 = vpop.f32.mrb[0].mxu0
        %v962 = vadd.f32 %v922, %v961
        %v963 = vpop.f32.mrb[0].mxu0
        %v964 = vpop.f32.mrb[0].mxu0
        %v965 = vpop.f32.mrb[0].mxu0
        %966 = vdwg.mxu0
        %967 = vmatprep.subr.bf16.mxu0 0
        %968 = vmatpush1.bf16.msra.mxu0 %v655
        %969 = vmatprep.subr.bf16.mxu0 0
        %970 = vmatpush1.bf16.msra.mxu0 %v656
        %971 = vmatprep.subr.bf16.mxu0 0
        %972 = vmatpush1.bf16.msra.mxu0 %v657
        %973 = vmatprep.subr.bf16.mxu0 0
        %974 = vmatpush1.bf16.msra.mxu0 %v658
        %975 = vmatprep.subr.bf16.mxu0 0
        %976 = vmatpush1.bf16.msra.mxu0 %v659
        %977 = vmatprep.subr.bf16.mxu0 0
        %978 = vmatpush1.bf16.msra.mxu0 %v660
        %979 = vmatprep.subr.bf16.mxu0 0
        %980 = vmatpush1.bf16.msra.mxu0 %v661
        %981 = vmatprep.subr.bf16.mxu0 0
        %982 = vmatpush1.bf16.msra.mxu0 %v662
        %983 = vmatprep.subr.bf16.mxu0 0
        %984 = vmatpush1.bf16.msra.mxu0 %v663
        %985 = vmatprep.subr.bf16.mxu0 0
        %986 = vmatpush1.bf16.msra.mxu0 %v664
        %987 = vmatprep.subr.bf16.mxu0 0
        %988 = vmatpush1.bf16.msra.mxu0 %v665
        %989 = vmatprep.subr.bf16.mxu0 0
        %990 = vmatpush1.bf16.msra.mxu0 %v666
        %991 = vmatprep.subr.bf16.mxu0 0
        %992 = vmatpush1.bf16.msra.mxu0 %v667
        %993 = vmatprep.subr.bf16.mxu0 0
        %994 = vmatpush1.bf16.msra.mxu0 %v668
        %995 = vmatprep.subr.bf16.mxu0 0
        %996 = vmatpush1.bf16.msra.mxu0 %v669
        %997 = vmatprep.subr.bf16.mxu0 0
        %998 = vmatpush1.bf16.msra.mxu0 %v670
        %999 = vmatprep.mubr.bf16.mxu0 %v226
        %1000 = vmatmul.mubr.bf16.gmra.mrb[0].mxu0 %v225
        %v1001 = vpop.f32.mrb[0].mxu0
        %v1002 = vadd.f32 %v962, %v1001
        %v1003 = vpop.f32.mrb[0].mxu0
        %v1004 = vpop.f32.mrb[0].mxu0
        %v1005 = vpop.f32.mrb[0].mxu0
        %1006 = vdwg.mxu0
        %1007 = vmatprep.subr.bf16.mxu0 0
        %1008 = vmatpush1.bf16.msra.mxu0 %v671
        %1009 = vmatprep.subr.bf16.mxu0 0
        %1010 = vmatpush1.bf16.msra.mxu0 %v672
        %1011 = vmatprep.subr.bf16.mxu0 0
        %1012 = vmatpush1.bf16.msra.mxu0 %v673
        %1013 = vmatprep.subr.bf16.mxu0 0
        %1014 = vmatpush1.bf16.msra.mxu0 %v674
        %1015 = vmatprep.subr.bf16.mxu0 0
        %1016 = vmatpush1.bf16.msra.mxu0 %v675
        %1017 = vmatprep.subr.bf16.mxu0 0
        %1018 = vmatpush1.bf16.msra.mxu0 %v676
        %1019 = vmatprep.subr.bf16.mxu0 0
        %1020 = vmatpush1.bf16.msra.mxu0 %v677
        %1021 = vmatprep.subr.bf16.mxu0 0
        %1022 = vmatpush1.bf16.msra.mxu0 %v678
        %1023 = vmatprep.subr.bf16.mxu0 0
        %1024 = vmatpush1.bf16.msra.mxu0 %v679
        %1025 = vmatprep.subr.bf16.mxu0 0
        %1026 = vmatpush1.bf16.msra.mxu0 %v680
        %1027 = vmatprep.subr.bf16.mxu0 0
        %1028 = vmatpush1.bf16.msra.mxu0 %v681
        %1029 = vmatprep.subr.bf16.mxu0 0
        %1030 = vmatpush1.bf16.msra.mxu0 %v682
        %1031 = vmatprep.subr.bf16.mxu0 0
        %1032 = vmatpush1.bf16.msra.mxu0 %v683
        %1033 = vmatprep.subr.bf16.mxu0 0
        %1034 = vmatpush1.bf16.msra.mxu0 %v684
        %1035 = vmatprep.subr.bf16.mxu0 0
        %1036 = vmatpush1.bf16.msra.mxu0 %v685
        %1037 = vmatprep.subr.bf16.mxu0 0
        %1038 = vmatpush1.bf16.msra.mxu0 %v686
        %1039 = vmatprep.mubr.bf16.mxu0 %v228
        %1040 = vmatmul.mubr.bf16.gmra.mrb[0].mxu0 %v227
        %v1041 = vpop.f32.mrb[0].mxu0
        %v1042 = vadd.f32 %v1002, %v1041
        %v1043 = vpop.f32.mrb[0].mxu0
        %v1044 = vpop.f32.mrb[0].mxu0
        %v1045 = vpop.f32.mrb[0].mxu0
        %1046 = vdwg.mxu0
        %1047 = vmatprep.subr.bf16.mxu0 0
        %1048 = vmatpush1.bf16.msra.mxu0 %v687
        %1049 = vmatprep.subr.bf16.mxu0 0
        %1050 = vmatpush1.bf16.msra.mxu0 %v688
        %1051 = vmatprep.subr.bf16.mxu0 0
        %1052 = vmatpush1.bf16.msra.mxu0 %v689
        %1053 = vmatprep.subr.bf16.mxu0 0
        %1054 = vmatpush1.bf16.msra.mxu0 %v690
        %1055 = vmatprep.subr.bf16.mxu0 0
        %1056 = vmatpush1.bf16.msra.mxu0 %v691
        %1057 = vmatprep.subr.bf16.mxu0 0
        %1058 = vmatpush1.bf16.msra.mxu0 %v692
        %1059 = vmatprep.subr.bf16.mxu0 0
        %1060 = vmatpush1.bf16.msra.mxu0 %v693
        %1061 = vmatprep.subr.bf16.mxu0 0
        %1062 = vmatpush1.bf16.msra.mxu0 %v694
        %1063 = vmatprep.subr.bf16.mxu0 0
        %1064 = vmatpush1.bf16.msra.mxu0 %v695
        %1065 = vmatprep.subr.bf16.mxu0 0
        %1066 = vmatpush1.bf16.msra.mxu0 %v696
        %1067 = vmatprep.subr.bf16.mxu0 0
        %1068 = vmatpush1.bf16.msra.mxu0 %v697
        %1069 = vmatprep.subr.bf16.mxu0 0
        %1070 = vmatpush1.bf16.msra.mxu0 %v698
        %1071 = vmatprep.subr.bf16.mxu0 0
        %1072 = vmatpush1.bf16.msra.mxu0 %v699
        %1073 = vmatprep.subr.bf16.mxu0 0
        %1074 = vmatpush1.bf16.msra.mxu0 %v700
        %1075 = vmatprep.subr.bf16.mxu0 0
        %1076 = vmatpush1.bf16.msra.mxu0 %v701
        %1077 = vmatprep.subr.bf16.mxu0 0
        %1078 = vmatpush1.bf16.msra.mxu0 %v702
        %1079 = vmatprep.mubr.bf16.mxu0 %v230
        %1080 = vmatmul.mubr.bf16.gmra.mrb[0].mxu0 %v229
        %v1081 = vpop.f32.mrb[0].mxu0
        %v1082 = vadd.f32 %v1042, %v1081
        %v1083 = vpop.f32.mrb[0].mxu0
        %v1084 = vpop.f32.mrb[0].mxu0
        %v1085 = vpop.f32.mrb[0].mxu0
        %1086 = vdwg.mxu0
        %v1087 = vld [vmem:[#allocation5] sm:$0xf]
        %v1088 = vld [vmem:[#allocation5 + $0x4] sm:$0xf]
        %v1089 = vld [vmem:[#allocation5 + $0x8] sm:$0xf]
        %v1090 = vld [vmem:[#allocation5 + $0xc] sm:$0xf]
        %v1091 = vld [vmem:[#allocation5 + $0x10] sm:$0xf]
        %v1092 = vld [vmem:[#allocation5 + $0x14] sm:$0xf]
        %v1093 = vld [vmem:[#allocation5 + $0x18] sm:$0xf]
        %v1094 = vld [vmem:[#allocation5 + $0x1c] sm:$0xf]
        %v1095 = vld [vmem:[#allocation5 + $0x20] sm:$0xf]
        %v1096 = vld [vmem:[#allocation5 + $0x24] sm:$0xf]
        %v1097 = vld [vmem:[#allocation5 + $0x28] sm:$0xf]
        %v1098 = vld [vmem:[#allocation5 + $0x2c] sm:$0xf]
        %v1099 = vld [vmem:[#allocation5 + $0x30] sm:$0xf]
        %v1100 = vld [vmem:[#allocation5 + $0x34] sm:$0xf]
        %v1101 = vld [vmem:[#allocation5 + $0x38] sm:$0xf]
        %v1102 = vld [vmem:[#allocation5 + $0x3c] sm:$0xf]
        %v1103 = vld [vmem:[#allocation5 + $0x40] sm:$0xf]
        %v1104 = vld [vmem:[#allocation5 + $0x44] sm:$0xf]
        %v1105 = vld [vmem:[#allocation5 + $0x48] sm:$0xf]
        %v1106 = vld [vmem:[#allocation5 + $0x4c] sm:$0xf]
        %v1107 = vld [vmem:[#allocation5 + $0x50] sm:$0xf]
        %v1108 = vld [vmem:[#allocation5 + $0x54] sm:$0xf]
        %v1109 = vld [vmem:[#allocation5 + $0x58] sm:$0xf]
        %v1110 = vld [vmem:[#allocation5 + $0x5c] sm:$0xf]
        %v1111 = vld [vmem:[#allocation5 + $0x60] sm:$0xf]
        %v1112 = vld [vmem:[#allocation5 + $0x64] sm:$0xf]
        %v1113 = vld [vmem:[#allocation5 + $0x68] sm:$0xf]
        %v1114 = vld [vmem:[#allocation5 + $0x6c] sm:$0xf]
        %v1115 = vld [vmem:[#allocation5 + $0x70] sm:$0xf]
        %v1116 = vld [vmem:[#allocation5 + $0x74] sm:$0xf]
        %v1117 = vld [vmem:[#allocation5 + $0x78] sm:$0xf]
        %v1118 = vld [vmem:[#allocation5 + $0x7c] sm:$0xf]
        %v1119 = vld [vmem:[#allocation5 + $0x80] sm:$0xf]
        %v1120 = vld [vmem:[#allocation5 + $0x84] sm:$0xf]
        %v1121 = vld [vmem:[#allocation5 + $0x88] sm:$0xf]
        %v1122 = vld [vmem:[#allocation5 + $0x8c] sm:$0xf]
        %v1123 = vld [vmem:[#allocation5 + $0x90] sm:$0xf]
        %v1124 = vld [vmem:[#allocation5 + $0x94] sm:$0xf]
        %v1125 = vld [vmem:[#allocation5 + $0x98] sm:$0xf]
        %v1126 = vld [vmem:[#allocation5 + $0x9c] sm:$0xf]
        %v1127 = vld [vmem:[#allocation5 + $0xa0] sm:$0xf]
        %v1128 = vld [vmem:[#allocation5 + $0xa4] sm:$0xf]
        %v1129 = vld [vmem:[#allocation5 + $0xa8] sm:$0xf]
        %v1130 = vld [vmem:[#allocation5 + $0xac] sm:$0xf]
        %v1131 = vld [vmem:[#allocation5 + $0xb0] sm:$0xf]
        %v1132 = vld [vmem:[#allocation5 + $0xb4] sm:$0xf]
        %v1133 = vld [vmem:[#allocation5 + $0xb8] sm:$0xf]
        %v1134 = vld [vmem:[#allocation5 + $0xbc] sm:$0xf]
        %v1135 = vld [vmem:[#allocation5 + $0xc0] sm:$0xf]
        %v1136 = vld [vmem:[#allocation5 + $0xc4] sm:$0xf]
        %v1137 = vld [vmem:[#allocation5 + $0xc8] sm:$0xf]
        %v1138 = vld [vmem:[#allocation5 + $0xcc] sm:$0xf]
        %v1139 = vld [vmem:[#allocation5 + $0xd0] sm:$0xf]
        %v1140 = vld [vmem:[#allocation5 + $0xd4] sm:$0xf]
        %v1141 = vld [vmem:[#allocation5 + $0xd8] sm:$0xf]
        %v1142 = vld [vmem:[#allocation5 + $0xdc] sm:$0xf]
        %v1143 = vld [vmem:[#allocation5 + $0xe0] sm:$0xf]
        %v1144 = vld [vmem:[#allocation5 + $0xe4] sm:$0xf]
        %v1145 = vld [vmem:[#allocation5 + $0xe8] sm:$0xf]
        %v1146 = vld [vmem:[#allocation5 + $0xec] sm:$0xf]
        %v1147 = vld [vmem:[#allocation5 + $0xf0] sm:$0xf]
        %v1148 = vld [vmem:[#allocation5 + $0xf4] sm:$0xf]
        %v1149 = vld [vmem:[#allocation5 + $0xf8] sm:$0xf]
        %v1150 = vld [vmem:[#allocation5 + $0xfc] sm:$0xf]
        %v1151 = vld [vmem:[#allocation5 + $0x100] sm:$0xf]
        %v1152 = vld [vmem:[#allocation5 + $0x104] sm:$0xf]
        %v1153 = vld [vmem:[#allocation5 + $0x108] sm:$0xf]
        %v1154 = vld [vmem:[#allocation5 + $0x10c] sm:$0xf]
        %v1155 = vld [vmem:[#allocation5 + $0x110] sm:$0xf]
        %v1156 = vld [vmem:[#allocation5 + $0x114] sm:$0xf]
        %v1157 = vld [vmem:[#allocation5 + $0x118] sm:$0xf]
        %v1158 = vld [vmem:[#allocation5 + $0x11c] sm:$0xf]
        %v1159 = vld [vmem:[#allocation5 + $0x120] sm:$0xf]
        %v1160 = vld [vmem:[#allocation5 + $0x124] sm:$0xf]
        %v1161 = vld [vmem:[#allocation5 + $0x128] sm:$0xf]
        %v1162 = vld [vmem:[#allocation5 + $0x12c] sm:$0xf]
        %v1163 = vld [vmem:[#allocation5 + $0x130] sm:$0xf]
        %v1164 = vld [vmem:[#allocation5 + $0x134] sm:$0xf]
        %v1165 = vld [vmem:[#allocation5 + $0x138] sm:$0xf]
        %v1166 = vld [vmem:[#allocation5 + $0x13c] sm:$0xf]
        %v1167 = vld [vmem:[#allocation5 + $0x140] sm:$0xf]
        %v1168 = vld [vmem:[#allocation5 + $0x144] sm:$0xf]
        %v1169 = vld [vmem:[#allocation5 + $0x148] sm:$0xf]
        %v1170 = vld [vmem:[#allocation5 + $0x14c] sm:$0xf]
        %v1171 = vld [vmem:[#allocation5 + $0x150] sm:$0xf]
        %v1172 = vld [vmem:[#allocation5 + $0x154] sm:$0xf]
        %v1173 = vld [vmem:[#allocation5 + $0x158] sm:$0xf]
        %v1174 = vld [vmem:[#allocation5 + $0x15c] sm:$0xf]
        %v1175 = vld [vmem:[#allocation5 + $0x160] sm:$0xf]
        %v1176 = vld [vmem:[#allocation5 + $0x164] sm:$0xf]
        %v1177 = vld [vmem:[#allocation5 + $0x168] sm:$0xf]
        %v1178 = vld [vmem:[#allocation5 + $0x16c] sm:$0xf]
        %v1179 = vld [vmem:[#allocation5 + $0x170] sm:$0xf]
        %v1180 = vld [vmem:[#allocation5 + $0x174] sm:$0xf]
        %v1181 = vld [vmem:[#allocation5 + $0x178] sm:$0xf]
        %v1182 = vld [vmem:[#allocation5 + $0x17c] sm:$0xf]
        %v1183 = vld [vmem:[#allocation5 + $0x180] sm:$0xf]
        %v1184 = vld [vmem:[#allocation5 + $0x184] sm:$0xf]
        %v1185 = vld [vmem:[#allocation5 + $0x188] sm:$0xf]
        %v1186 = vld [vmem:[#allocation5 + $0x18c] sm:$0xf]
        %v1187 = vld [vmem:[#allocation5 + $0x190] sm:$0xf]
        %v1188 = vld [vmem:[#allocation5 + $0x194] sm:$0xf]
        %v1189 = vld [vmem:[#allocation5 + $0x198] sm:$0xf]
        %v1190 = vld [vmem:[#allocation5 + $0x19c] sm:$0xf]
        %v1191 = vld [vmem:[#allocation5 + $0x1a0] sm:$0xf]
        %v1192 = vld [vmem:[#allocation5 + $0x1a4] sm:$0xf]
        %v1193 = vld [vmem:[#allocation5 + $0x1a8] sm:$0xf]
        %v1194 = vld [vmem:[#allocation5 + $0x1ac] sm:$0xf]
        %v1195 = vld [vmem:[#allocation5 + $0x1b0] sm:$0xf]
        %v1196 = vld [vmem:[#allocation5 + $0x1b4] sm:$0xf]
        %v1197 = vld [vmem:[#allocation5 + $0x1b8] sm:$0xf]
        %v1198 = vld [vmem:[#allocation5 + $0x1bc] sm:$0xf]
        %v1199 = vld [vmem:[#allocation5 + $0x1c0] sm:$0xf]
        %v1200 = vld [vmem:[#allocation5 + $0x1c4] sm:$0xf]
        %v1201 = vld [vmem:[#allocation5 + $0x1c8] sm:$0xf]
        %v1202 = vld [vmem:[#allocation5 + $0x1cc] sm:$0xf]
        %v1203 = vld [vmem:[#allocation5 + $0x1d0] sm:$0xf]
        %v1204 = vld [vmem:[#allocation5 + $0x1d4] sm:$0xf]
        %v1205 = vld [vmem:[#allocation5 + $0x1d8] sm:$0xf]
        %v1206 = vld [vmem:[#allocation5 + $0x1dc] sm:$0xf]
        %v1207 = vld [vmem:[#allocation5 + $0x1e0] sm:$0xf]
        %v1208 = vld [vmem:[#allocation5 + $0x1e4] sm:$0xf]
        %v1209 = vld [vmem:[#allocation5 + $0x1e8] sm:$0xf]
        %v1210 = vld [vmem:[#allocation5 + $0x1ec] sm:$0xf]
        %v1211 = vld [vmem:[#allocation5 + $0x1f0] sm:$0xf]
        %v1212 = vld [vmem:[#allocation5 + $0x1f4] sm:$0xf]
        %v1213 = vld [vmem:[#allocation5 + $0x1f8] sm:$0xf]
        %v1214 = vld [vmem:[#allocation5 + $0x1fc] sm:$0xf]
        %v1343 = vunpack.c.l.b16 %v1087
        %v1344 = vunpack.c.l.b16 %v1088
        %v1345 = vunpack.c.l.b16 %v1089
        %v1346 = vunpack.c.l.b16 %v1090
        %v1347 = vunpack.c.l.b16 %v1091
        %v1348 = vunpack.c.l.b16 %v1092
        %v1349 = vunpack.c.l.b16 %v1093
        %v1350 = vunpack.c.l.b16 %v1094
        %v1351 = vunpack.c.l.b16 %v1095
        %v1352 = vunpack.c.l.b16 %v1096
        %v1353 = vunpack.c.l.b16 %v1097
        %v1354 = vunpack.c.l.b16 %v1098
        %v1355 = vunpack.c.l.b16 %v1099
        %v1356 = vunpack.c.l.b16 %v1100
        %v1357 = vunpack.c.l.b16 %v1101
        %v1358 = vunpack.c.l.b16 %v1102
        %v1359 = vunpack.c.l.b16 %v1103
        %v1360 = vunpack.c.l.b16 %v1104
        %v1361 = vunpack.c.l.b16 %v1105
        %v1362 = vunpack.c.l.b16 %v1106
        %v1363 = vunpack.c.l.b16 %v1107
        %v1364 = vunpack.c.l.b16 %v1108
        %v1365 = vunpack.c.l.b16 %v1109
        %v1366 = vunpack.c.l.b16 %v1110
        %v1367 = vunpack.c.l.b16 %v1111
        %v1368 = vunpack.c.l.b16 %v1112
        %v1369 = vunpack.c.l.b16 %v1113
        %v1370 = vunpack.c.l.b16 %v1114
        %v1371 = vunpack.c.l.b16 %v1115
        %v1372 = vunpack.c.l.b16 %v1116
        %v1373 = vunpack.c.l.b16 %v1117
        %v1374 = vunpack.c.l.b16 %v1118
        %v1375 = vunpack.c.l.b16 %v1119
        %v1376 = vunpack.c.l.b16 %v1120
        %v1377 = vunpack.c.l.b16 %v1121
        %v1378 = vunpack.c.l.b16 %v1122
        %v1379 = vunpack.c.l.b16 %v1123
        %v1380 = vunpack.c.l.b16 %v1124
        %v1381 = vunpack.c.l.b16 %v1125
        %v1382 = vunpack.c.l.b16 %v1126
        %v1383 = vunpack.c.l.b16 %v1127
        %v1384 = vunpack.c.l.b16 %v1128
        %v1385 = vunpack.c.l.b16 %v1129
        %v1386 = vunpack.c.l.b16 %v1130
        %v1387 = vunpack.c.l.b16 %v1131
        %v1388 = vunpack.c.l.b16 %v1132
        %v1389 = vunpack.c.l.b16 %v1133
        %v1390 = vunpack.c.l.b16 %v1134
        %v1391 = vunpack.c.l.b16 %v1135
        %v1392 = vunpack.c.l.b16 %v1136
        %v1393 = vunpack.c.l.b16 %v1137
        %v1394 = vunpack.c.l.b16 %v1138
        %v1395 = vunpack.c.l.b16 %v1139
        %v1396 = vunpack.c.l.b16 %v1140
        %v1397 = vunpack.c.l.b16 %v1141
        %v1398 = vunpack.c.l.b16 %v1142
        %v1399 = vunpack.c.l.b16 %v1143
        %v1400 = vunpack.c.l.b16 %v1144
        %v1401 = vunpack.c.l.b16 %v1145
        %v1402 = vunpack.c.l.b16 %v1146
        %v1403 = vunpack.c.l.b16 %v1147
        %v1404 = vunpack.c.l.b16 %v1148
        %v1405 = vunpack.c.l.b16 %v1149
        %v1406 = vunpack.c.l.b16 %v1150
        %v1407 = vunpack.c.l.b16 %v1151
        %v1408 = vunpack.c.l.b16 %v1152
        %v1409 = vunpack.c.l.b16 %v1153
        %v1410 = vunpack.c.l.b16 %v1154
        %v1411 = vunpack.c.l.b16 %v1155
        %v1412 = vunpack.c.l.b16 %v1156
        %v1413 = vunpack.c.l.b16 %v1157
        %v1414 = vunpack.c.l.b16 %v1158
        %v1415 = vunpack.c.l.b16 %v1159
        %v1416 = vunpack.c.l.b16 %v1160
        %v1417 = vunpack.c.l.b16 %v1161
        %v1418 = vunpack.c.l.b16 %v1162
        %v1419 = vunpack.c.l.b16 %v1163
        %v1420 = vunpack.c.l.b16 %v1164
        %v1421 = vunpack.c.l.b16 %v1165
        %v1422 = vunpack.c.l.b16 %v1166
        %v1423 = vunpack.c.l.b16 %v1167
        %v1424 = vunpack.c.l.b16 %v1168
        %v1425 = vunpack.c.l.b16 %v1169
        %v1426 = vunpack.c.l.b16 %v1170
        %v1427 = vunpack.c.l.b16 %v1171
        %v1428 = vunpack.c.l.b16 %v1172
        %v1429 = vunpack.c.l.b16 %v1173
        %v1430 = vunpack.c.l.b16 %v1174
        %v1431 = vunpack.c.l.b16 %v1175
        %v1432 = vunpack.c.l.b16 %v1176
        %v1433 = vunpack.c.l.b16 %v1177
        %v1434 = vunpack.c.l.b16 %v1178
        %v1435 = vunpack.c.l.b16 %v1179
        %v1436 = vunpack.c.l.b16 %v1180
        %v1437 = vunpack.c.l.b16 %v1181
        %v1438 = vunpack.c.l.b16 %v1182
        %v1439 = vunpack.c.l.b16 %v1183
        %v1440 = vunpack.c.l.b16 %v1184
        %v1441 = vunpack.c.l.b16 %v1185
        %v1442 = vunpack.c.l.b16 %v1186
        %v1443 = vunpack.c.l.b16 %v1187
        %v1444 = vunpack.c.l.b16 %v1188
        %v1445 = vunpack.c.l.b16 %v1189
        %v1446 = vunpack.c.l.b16 %v1190
        %v1447 = vunpack.c.l.b16 %v1191
        %v1448 = vunpack.c.l.b16 %v1192
        %v1449 = vunpack.c.l.b16 %v1193
        %v1450 = vunpack.c.l.b16 %v1194
        %v1451 = vunpack.c.l.b16 %v1195
        %v1452 = vunpack.c.l.b16 %v1196
        %v1453 = vunpack.c.l.b16 %v1197
        %v1454 = vunpack.c.l.b16 %v1198
        %v1455 = vunpack.c.l.b16 %v1199
        %v1456 = vunpack.c.l.b16 %v1200
        %v1457 = vunpack.c.l.b16 %v1201
        %v1458 = vunpack.c.l.b16 %v1202
        %v1459 = vunpack.c.l.b16 %v1203
        %v1460 = vunpack.c.l.b16 %v1204
        %v1461 = vunpack.c.l.b16 %v1205
        %v1462 = vunpack.c.l.b16 %v1206
        %v1463 = vunpack.c.l.b16 %v1207
        %v1464 = vunpack.c.l.b16 %v1208
        %v1465 = vunpack.c.l.b16 %v1209
        %v1466 = vunpack.c.l.b16 %v1210
        %v1467 = vunpack.c.l.b16 %v1211
        %v1468 = vunpack.c.l.b16 %v1212
        %v1469 = vunpack.c.l.b16 %v1213
        %v1470 = vunpack.c.l.b16 %v1214
        %v1471 = vpack.c.b16 %v1344, %v1343
        %v1472 = vpack.c.b16 %v1346, %v1345
        %v1473 = vpack.c.b16 %v1348, %v1347
        %v1474 = vpack.c.b16 %v1350, %v1349
        %v1475 = vpack.c.b16 %v1352, %v1351
        %v1476 = vpack.c.b16 %v1354, %v1353
        %v1477 = vpack.c.b16 %v1356, %v1355
        %v1478 = vpack.c.b16 %v1358, %v1357
        %v1479 = vpack.c.b16 %v1360, %v1359
        %v1480 = vpack.c.b16 %v1362, %v1361
        %v1481 = vpack.c.b16 %v1364, %v1363
        %v1482 = vpack.c.b16 %v1366, %v1365
        %v1483 = vpack.c.b16 %v1368, %v1367
        %v1484 = vpack.c.b16 %v1370, %v1369
        %v1485 = vpack.c.b16 %v1372, %v1371
        %v1486 = vpack.c.b16 %v1374, %v1373
        %v1487 = vpack.c.b16 %v1376, %v1375
        %v1488 = vpack.c.b16 %v1378, %v1377
        %v1489 = vpack.c.b16 %v1380, %v1379
        %v1490 = vpack.c.b16 %v1382, %v1381
        %v1491 = vpack.c.b16 %v1384, %v1383
        %v1492 = vpack.c.b16 %v1386, %v1385
        %v1493 = vpack.c.b16 %v1388, %v1387
        %v1494 = vpack.c.b16 %v1390, %v1389
        %v1495 = vpack.c.b16 %v1392, %v1391
        %v1496 = vpack.c.b16 %v1394, %v1393
        %v1497 = vpack.c.b16 %v1396, %v1395
        %v1498 = vpack.c.b16 %v1398, %v1397
        %v1499 = vpack.c.b16 %v1400, %v1399
        %v1500 = vpack.c.b16 %v1402, %v1401
        %v1501 = vpack.c.b16 %v1404, %v1403
        %v1502 = vpack.c.b16 %v1406, %v1405
        %v1503 = vpack.c.b16 %v1408, %v1407
        %v1504 = vpack.c.b16 %v1410, %v1409
        %v1505 = vpack.c.b16 %v1412, %v1411
        %v1506 = vpack.c.b16 %v1414, %v1413
        %v1507 = vpack.c.b16 %v1416, %v1415
        %v1508 = vpack.c.b16 %v1418, %v1417
        %v1509 = vpack.c.b16 %v1420, %v1419
        %v1510 = vpack.c.b16 %v1422, %v1421
        %v1511 = vpack.c.b16 %v1424, %v1423
        %v1512 = vpack.c.b16 %v1426, %v1425
        %v1513 = vpack.c.b16 %v1428, %v1427
        %v1514 = vpack.c.b16 %v1430, %v1429
        %v1515 = vpack.c.b16 %v1432, %v1431
        %v1516 = vpack.c.b16 %v1434, %v1433
        %v1517 = vpack.c.b16 %v1436, %v1435
        %v1518 = vpack.c.b16 %v1438, %v1437
        %v1519 = vpack.c.b16 %v1440, %v1439
        %v1520 = vpack.c.b16 %v1442, %v1441
        %v1521 = vpack.c.b16 %v1444, %v1443
        %v1522 = vpack.c.b16 %v1446, %v1445
        %v1523 = vpack.c.b16 %v1448, %v1447
        %v1524 = vpack.c.b16 %v1450, %v1449
        %v1525 = vpack.c.b16 %v1452, %v1451
        %v1526 = vpack.c.b16 %v1454, %v1453
        %v1527 = vpack.c.b16 %v1456, %v1455
        %v1528 = vpack.c.b16 %v1458, %v1457
        %v1529 = vpack.c.b16 %v1460, %v1459
        %v1530 = vpack.c.b16 %v1462, %v1461
        %v1531 = vpack.c.b16 %v1464, %v1463
        %v1532 = vpack.c.b16 %v1466, %v1465
        %v1533 = vpack.c.b16 %v1468, %v1467
        %v1534 = vpack.c.b16 %v1470, %v1469
        %1599 = vmatprep.subr.bf16.mxu0 0
        %1600 = vmatpush1.bf16.msra.mxu0 %v1471
        %1601 = vmatprep.subr.bf16.mxu0 0
        %1602 = vmatpush1.bf16.msra.mxu0 %v1472
        %1603 = vmatprep.subr.bf16.mxu0 0
        %1604 = vmatpush1.bf16.msra.mxu0 %v1473
        %1605 = vmatprep.subr.bf16.mxu0 0
        %1606 = vmatpush1.bf16.msra.mxu0 %v1474
        %1607 = vmatprep.subr.bf16.mxu0 0
        %1608 = vmatpush1.bf16.msra.mxu0 %v1475
        %1609 = vmatprep.subr.bf16.mxu0 0
        %1610 = vmatpush1.bf16.msra.mxu0 %v1476
        %1611 = vmatprep.subr.bf16.mxu0 0
        %1612 = vmatpush1.bf16.msra.mxu0 %v1477
        %1613 = vmatprep.subr.bf16.mxu0 0
        %1614 = vmatpush1.bf16.msra.mxu0 %v1478
        %1615 = vmatprep.subr.bf16.mxu0 0
        %1616 = vmatpush1.bf16.msra.mxu0 %v1479
        %1617 = vmatprep.subr.bf16.mxu0 0
        %1618 = vmatpush1.bf16.msra.mxu0 %v1480
        %1619 = vmatprep.subr.bf16.mxu0 0
        %1620 = vmatpush1.bf16.msra.mxu0 %v1481
        %1621 = vmatprep.subr.bf16.mxu0 0
        %1622 = vmatpush1.bf16.msra.mxu0 %v1482
        %1623 = vmatprep.subr.bf16.mxu0 0
        %1624 = vmatpush1.bf16.msra.mxu0 %v1483
        %1625 = vmatprep.subr.bf16.mxu0 0
        %1626 = vmatpush1.bf16.msra.mxu0 %v1484
        %1627 = vmatprep.subr.bf16.mxu0 0
        %1628 = vmatpush1.bf16.msra.mxu0 %v1485
        %1629 = vmatprep.subr.bf16.mxu0 0
        %1630 = vmatpush1.bf16.msra.mxu0 %v1486
        %1631 = vmatprep.mubr.bf16.mxu0 %v224
        %1632 = vmatmul.mubr.bf16.gmra.mrb[0].mxu0 %v223
        %v1633 = vpop.f32.mrb[0].mxu0
        %v1634 = vadd.f32 0.0, %v1633
        %v1635 = vpop.f32.mrb[0].mxu0
        %v1636 = vpop.f32.mrb[0].mxu0
        %v1637 = vpop.f32.mrb[0].mxu0
        %1638 = vdwg.mxu0
        %1639 = vmatprep.subr.bf16.mxu0 0
        %1640 = vmatpush1.bf16.msra.mxu0 %v1487
        %1641 = vmatprep.subr.bf16.mxu0 0
        %1642 = vmatpush1.bf16.msra.mxu0 %v1488
        %1643 = vmatprep.subr.bf16.mxu0 0
        %1644 = vmatpush1.bf16.msra.mxu0 %v1489
        %1645 = vmatprep.subr.bf16.mxu0 0
        %1646 = vmatpush1.bf16.msra.mxu0 %v1490
        %1647 = vmatprep.subr.bf16.mxu0 0
        %1648 = vmatpush1.bf16.msra.mxu0 %v1491
        %1649 = vmatprep.subr.bf16.mxu0 0
        %1650 = vmatpush1.bf16.msra.mxu0 %v1492
        %1651 = vmatprep.subr.bf16.mxu0 0
        %1652 = vmatpush1.bf16.msra.mxu0 %v1493
        %1653 = vmatprep.subr.bf16.mxu0 0
        %1654 = vmatpush1.bf16.msra.mxu0 %v1494
        %1655 = vmatprep.subr.bf16.mxu0 0
        %1656 = vmatpush1.bf16.msra.mxu0 %v1495
        %1657 = vmatprep.subr.bf16.mxu0 0
        %1658 = vmatpush1.bf16.msra.mxu0 %v1496
        %1659 = vmatprep.subr.bf16.mxu0 0
        %1660 = vmatpush1.bf16.msra.mxu0 %v1497
        %1661 = vmatprep.subr.bf16.mxu0 0
        %1662 = vmatpush1.bf16.msra.mxu0 %v1498
        %1663 = vmatprep.subr.bf16.mxu0 0
        %1664 = vmatpush1.bf16.msra.mxu0 %v1499
        %1665 = vmatprep.subr.bf16.mxu0 0
        %1666 = vmatpush1.bf16.msra.mxu0 %v1500
        %1667 = vmatprep.subr.bf16.mxu0 0
        %1668 = vmatpush1.bf16.msra.mxu0 %v1501
        %1669 = vmatprep.subr.bf16.mxu0 0
        %1670 = vmatpush1.bf16.msra.mxu0 %v1502
        %1671 = vmatprep.mubr.bf16.mxu0 %v226
        %1672 = vmatmul.mubr.bf16.gmra.mrb[0].mxu0 %v225
        %v1673 = vpop.f32.mrb[0].mxu0
        %v1674 = vadd.f32 %v1634, %v1673
        %v1675 = vpop.f32.mrb[0].mxu0
        %v1676 = vpop.f32.mrb[0].mxu0
        %v1677 = vpop.f32.mrb[0].mxu0
        %1678 = vdwg.mxu0
        %1679 = vmatprep.subr.bf16.mxu0 0
        %1680 = vmatpush1.bf16.msra.mxu0 %v1503
        %1681 = vmatprep.subr.bf16.mxu0 0
        %1682 = vmatpush1.bf16.msra.mxu0 %v1504
        %1683 = vmatprep.subr.bf16.mxu0 0
        %1684 = vmatpush1.bf16.msra.mxu0 %v1505
        %1685 = vmatprep.subr.bf16.mxu0 0
        %1686 = vmatpush1.bf16.msra.mxu0 %v1506
        %1687 = vmatprep.subr.bf16.mxu0 0
        %1688 = vmatpush1.bf16.msra.mxu0 %v1507
        %1689 = vmatprep.subr.bf16.mxu0 0
        %1690 = vmatpush1.bf16.msra.mxu0 %v1508
        %1691 = vmatprep.subr.bf16.mxu0 0
        %1692 = vmatpush1.bf16.msra.mxu0 %v1509
        %1693 = vmatprep.subr.bf16.mxu0 0
        %1694 = vmatpush1.bf16.msra.mxu0 %v1510
        %1695 = vmatprep.subr.bf16.mxu0 0
        %1696 = vmatpush1.bf16.msra.mxu0 %v1511
        %1697 = vmatprep.subr.bf16.mxu0 0
        %1698 = vmatpush1.bf16.msra.mxu0 %v1512
        %1699 = vmatprep.subr.bf16.mxu0 0
        %1700 = vmatpush1.bf16.msra.mxu0 %v1513
        %1701 = vmatprep.subr.bf16.mxu0 0
        %1702 = vmatpush1.bf16.msra.mxu0 %v1514
        %1703 = vmatprep.subr.bf16.mxu0 0
        %1704 = vmatpush1.bf16.msra.mxu0 %v1515
        %1705 = vmatprep.subr.bf16.mxu0 0
        %1706 = vmatpush1.bf16.msra.mxu0 %v1516
        %1707 = vmatprep.subr.bf16.mxu0 0
        %1708 = vmatpush1.bf16.msra.mxu0 %v1517
        %1709 = vmatprep.subr.bf16.mxu0 0
        %1710 = vmatpush1.bf16.msra.mxu0 %v1518
        %1711 = vmatprep.mubr.bf16.mxu0 %v228
        %1712 = vmatmul.mubr.bf16.gmra.mrb[0].mxu0 %v227
        %v1713 = vpop.f32.mrb[0].mxu0
        %v1714 = vadd.f32 %v1674, %v1713
        %v1715 = vpop.f32.mrb[0].mxu0
        %v1716 = vpop.f32.mrb[0].mxu0
        %v1717 = vpop.f32.mrb[0].mxu0
        %1718 = vdwg.mxu0
        %1719 = vmatprep.subr.bf16.mxu0 0
        %1720 = vmatpush1.bf16.msra.mxu0 %v1519
        %1721 = vmatprep.subr.bf16.mxu0 0
        %1722 = vmatpush1.bf16.msra.mxu0 %v1520
        %1723 = vmatprep.subr.bf16.mxu0 0
        %1724 = vmatpush1.bf16.msra.mxu0 %v1521
        %1725 = vmatprep.subr.bf16.mxu0 0
        %1726 = vmatpush1.bf16.msra.mxu0 %v1522
        %1727 = vmatprep.subr.bf16.mxu0 0
        %1728 = vmatpush1.bf16.msra.mxu0 %v1523
        %1729 = vmatprep.subr.bf16.mxu0 0
        %1730 = vmatpush1.bf16.msra.mxu0 %v1524
        %1731 = vmatprep.subr.bf16.mxu0 0
        %1732 = vmatpush1.bf16.msra.mxu0 %v1525
        %1733 = vmatprep.subr.bf16.mxu0 0
        %1734 = vmatpush1.bf16.msra.mxu0 %v1526
        %1735 = vmatprep.subr.bf16.mxu0 0
        %1736 = vmatpush1.bf16.msra.mxu0 %v1527
        %1737 = vmatprep.subr.bf16.mxu0 0
        %1738 = vmatpush1.bf16.msra.mxu0 %v1528
        %1739 = vmatprep.subr.bf16.mxu0 0
        %1740 = vmatpush1.bf16.msra.mxu0 %v1529
        %1741 = vmatprep.subr.bf16.mxu0 0
        %1742 = vmatpush1.bf16.msra.mxu0 %v1530
        %1743 = vmatprep.subr.bf16.mxu0 0
        %1744 = vmatpush1.bf16.msra.mxu0 %v1531
        %1745 = vmatprep.subr.bf16.mxu0 0
        %1746 = vmatpush1.bf16.msra.mxu0 %v1532
        %1747 = vmatprep.subr.bf16.mxu0 0
        %1748 = vmatpush1.bf16.msra.mxu0 %v1533
        %1749 = vmatprep.subr.bf16.mxu0 0
        %1750 = vmatpush1.bf16.msra.mxu0 %v1534
        %1751 = vmatprep.mubr.bf16.mxu0 %v230
        %1752 = vmatmul.mubr.bf16.gmra.mrb[0].mxu0 %v229
        %v1753 = vpop.f32.mrb[0].mxu0
        %v1754 = vadd.f32 %v1714, %v1753
        %v1755 = vpop.f32.mrb[0].mxu0
        %v1756 = vpop.f32.mrb[0].mxu0
        %v1757 = vpop.f32.mrb[0].mxu0
        %1758 = vdwg.mxu0
        %v1759 = vadd.f32 %v1082, %v1754
        %1760 = vst [vmem:[%s213] sm:$0xff] %v1759
        %s1761 = sand.u32 %s95, 1
        %s1762 = scalar_lea.sflag [#allocation4], %s1761
        %s1763 = sand.u32 %s95, 1
        %s1764 = smul.addr %s1763, 8
        %s1765 = scalar_lea.vmem [#allocation8], %s1764
        // Predicated region
        $region45: #{tpu_custom_call.1} parent=31 // pred_check
          %p1766 = pneg %p105
        $region46: #{tpu_custom_call.1} parent=31 // pred_check_branch
          %1768 = sbr.rel (%p1766) target = $region48
        $region47: #{tpu_custom_call.1} parent=31 // pred_region
          %s1770 = ssub.s32 128, 128
          %1771 = vsyncadd %s1762, %s1770
          %s1772 = smul.addr %s19, 128
          %s1773 = scalar_lea.hbm %s3, %s1772
          %s1775 = sshll.u32 %s1765, 4
          %s1776 = int_to_ptr.vmem [resolvable:$true] %s1775
          %1778 = dma.vmem_to_hbm [thread:$0]  %s1776, 128, %s1773, %s1762
        $region48: #{tpu_custom_call.1} parent=31 // pred_fallthru
          _
      $region32: #{tpu_custom_call.1} parent=5 // pred_fallthru
        _
      %p1779 = scmp.le.s32.totalorder 2, %s14
      // Predicated region
      $region49: #{tpu_custom_call.1} parent=5 // pred_check
        %p1780 = pneg %p1779
      $region50: #{tpu_custom_call.1} parent=5 // pred_check_branch
        %1782 = sbr.rel (%p1780) target = $region52
      $region51: #{tpu_custom_call.1} parent=5 // pred_region
        %s1783 = ssub.s32 %s14, 2
        // Predicated region
        $region53: #{tpu_custom_call.1} parent=51 // pred_check
          %p1784 = pneg %p111
        $region54: #{tpu_custom_call.1} parent=51 // pred_check_branch
          %1786 = sbr.rel (%p1784) target = $region56
        $region55: #{tpu_custom_call.1} parent=51 // pred_region
          %s1787 = sand.u32 %s96, 1
          %s1788 = scalar_lea.sflag [#allocation4], %s1787
          %s1789 = sand.u32 %s96, 1
          %s1790 = smul.addr %s1789, 8
          %s1791 = scalar_lea.vmem [#allocation8], %s1790
          %1792 = dma.done %s1788, 128
        $region56: #{tpu_custom_call.1} parent=51 // pred_fallthru
          _
      $region52: #{tpu_custom_call.1} parent=5 // pred_fallthru
        _
    $region6: #{tpu_custom_call.1} parent=1 // loop_footer
      %s18 = sadd.s32 1, %s14
    $region7: #{tpu_custom_call.1} parent=1 // loop_footer_branch
      %13 = sbr.rel target = $region3
    $region8: #{tpu_custom_call.1} parent=1 // loop_exit
      _
    %1793 = vsyncpa [#allocation3], 1
    %s1794 = scalar_lea.sflag [#allocation3], 1
    %1795 = vsyncpa %s1794, 1
    %1796 = vsyncpa [#allocation6], 1
    %1797 = vsyncpa [#allocation4], 1
    %s1798 = scalar_lea.sflag [#allocation4], 1
    %1799 = vsyncpa %s1798, 1

</llo_original>
